<compile_context>
chip_gen: v5e
topology: v5e:2x2
jax: 0.10.0
libtpu: 0.0.40
codegen_flags: <defaults>
</compile_context>

<pallas_src>
import jax
import jax.numpy as jnp
from jax import lax
from jax.experimental import pallas as pl
from jax.experimental.pallas import tpu as pltpu


W_INFLIGHT = 8       # row-DMAs kept in flight per embedding table (review: 8-16)
COMPUTE_CHUNK = 128  # rows per rolled compute step (keeps unrolled code small)


def mf_bias_kernel(users_ref, movies_ref,          # scalar-prefetch (SMEM, int32)
                   bias_ref,                       # (tb, 1) combined bias, VMEM
                   uemb_hbm, iemb_hbm,             # full tables, HBM (pl.ANY)
                   o_ref,                          # (tb, 1) output block, VMEM
                   u_buf, v_buf,                   # (tb, D) gather scratch, VMEM
                   u_sem, v_sem):                  # (W_INFLIGHT,) DMA semaphores
    tb = u_buf.shape[0]
    base = pl.program_id(0) * tb

    # ---- fused gather: per-row DMAs with a sliding window of W in flight ----
    def start_row(r, slot):
        uidx = users_ref[base + r]
        iidx = movies_ref[base + r]
        pltpu.make_async_copy(uemb_hbm.at[pl.ds(uidx, 1)],
                              u_buf.at[pl.ds(r, 1)],
                              u_sem.at[slot]).start()
        pltpu.make_async_copy(iemb_hbm.at[pl.ds(iidx, 1)],
                              v_buf.at[pl.ds(r, 1)],
                              v_sem.at[slot]).start()

    # Prime the window (tb >= 128 > W_INFLIGHT always).
    for r in range(W_INFLIGHT):
        start_row(r, r)

    def gather_body(r, carry):
        slot = r % W_INFLIGHT
        # Wait for row r's two copies (descriptor only needs shape + sem).
        pltpu.make_async_copy(uemb_hbm.at[pl.ds(0, 1)],
                              u_buf.at[pl.ds(r, 1)],
                              u_sem.at[slot]).wait()
        pltpu.make_async_copy(iemb_hbm.at[pl.ds(0, 1)],
                              v_buf.at[pl.ds(r, 1)],
                              v_sem.at[slot]).wait()

        # Refill the slot that just freed.
        @pl.when(r + W_INFLIGHT < tb)
        def _():
            start_row(r + W_INFLIGHT, slot)

        return carry

    lax.fori_loop(0, tb, gather_body, None)

    # ---- dot product + bias (cheap; HBM traffic is the limiter, not VPU) ----
    def compute_body(c, carry):
        row0 = pl.multiple_of(c * COMPUTE_CHUNK, COMPUTE_CHUNK)
        u = u_buf[pl.ds(row0, COMPUTE_CHUNK), :]
        v = v_buf[pl.ds(row0, COMPUTE_CHUNK), :]
        dot = jnp.sum(u * v, axis=1, keepdims=True)            # (CHUNK, 1) f32
        o_ref[pl.ds(row0, COMPUTE_CHUNK), :] = (
            dot + bias_ref[pl.ds(row0, COMPUTE_CHUNK), :])
        return carry

    lax.fori_loop(0, tb // COMPUTE_CHUNK, compute_body, None)


def _choose_batch_tile(B, D, block_b):
    """Largest lane-aligned batch tile that fits a conservative VMEM budget."""
    dpad = 128 * ((D + 127) // 128)          # minor dim pads to 128 lanes in VMEM
    # Bytes of VMEM per batch row resident in one grid step:
    #   gather scratch (2 tables)           : 2 * dpad * 4
    #   (tb,1) bias block, double-buffered  : 2 * 512
    #   (tb,1) out  block, double-buffered  : 2 * 512
    per_row = 8 * dpad + 2048
    budget = 40 * 1024 * 1024                # safe on v5e/v6e (128 MiB) & v7x (64 MiB)
    tb = min(block_b, budget // per_row, 128 * ((B + 127) // 128))
    tb = max(128, (tb // 128) * 128)
    return tb, dpad


def mf_bias_forward(user_emb, user_bias, item_emb, item_bias, users, movies,
                    *, block_b=16384):
    B = users.shape[0]
    D = user_emb.shape[1]

    tb, dpad = _choose_batch_tile(B, D, block_b)
    nb = (B + tb - 1) // tb
    Bp = nb * tb

    # Pad only the tiny int32 index vectors (index 0 is always valid);
    # the padded rows are sliced off at the end.
    pad = Bp - B
    users_p = jnp.pad(users.astype(jnp.int32), (0, pad))
    movies_p = jnp.pad(movies.astype(jnp.int32), (0, pad))

    # Single combined bias stream (tiny gathers stay in glue).
    bias2d = (jnp.take(user_bias[:, 0], users_p)
              + jnp.take(item_bias[:, 0], movies_p))[:, None].astype(jnp.float32)

    # Explicit VMEM limit so the tile isn't rejected by the scoped default
    # (16 MiB on v5e, 32 MiB on v6e/v7x); capped well under v7x's 64 MiB.
    vmem_need = tb * (8 * dpad + 2048)
    vmem_limit = min(48 * 1024 * 1024,
                     max(32 * 1024 * 1024, vmem_need + (8 << 20)))

    out = pl.pallas_call(
        mf_bias_kernel,
        out_shape=jax.ShapeDtypeStruct((Bp, 1), jnp.float32),
        grid_spec=pltpu.PrefetchScalarGridSpec(
            num_scalar_prefetch=2,                       # users, movies -> SMEM
            grid=(nb,),
            in_specs=[
                pl.BlockSpec((tb, 1), lambda i, u, m: (i, 0)),   # combined bias
                pl.BlockSpec(memory_space=pl.ANY),               # user_emb (HBM)
                pl.BlockSpec(memory_space=pl.ANY),               # item_emb (HBM)
            ],
            out_specs=pl.BlockSpec((tb, 1), lambda i, u, m: (i, 0)),
            scratch_shapes=[
                pltpu.VMEM((tb, D), jnp.float32),                # gathered U rows
                pltpu.VMEM((tb, D), jnp.float32),                # gathered V rows
                pltpu.SemaphoreType.DMA((W_INFLIGHT,)),
                pltpu.SemaphoreType.DMA((W_INFLIGHT,)),
            ],
        ),
        compiler_params=pltpu.CompilerParams(
            dimension_semantics=("parallel",),
            vmem_limit_bytes=vmem_limit,
        ),
    )(users_p, movies_p, bias2d,
      user_emb.astype(jnp.float32), item_emb.astype(jnp.float32))

    return out[:B, 0]   # (B,), matching PyTorch's (U*V).sum(1) + b_u + b_v


def init_params(key, num_users, num_items, emb_size):
    k1, k2, k3, k4 = jax.random.split(key, 4)
    user_emb = jax.random.uniform(k1, (num_users, emb_size),
                                  minval=0.0, maxval=0.05, dtype=jnp.float32)
    item_emb = jax.random.uniform(k2, (num_items, emb_size),
                                  minval=0.0, maxval=0.05, dtype=jnp.float32)
    user_bias = jax.random.uniform(k3, (num_users, 1),
                                   minval=-0.01, maxval=0.01, dtype=jnp.float32)
    item_bias = jax.random.uniform(k4, (num_items, 1),
                                   minval=-0.01, maxval=0.01, dtype=jnp.float32)
    return user_emb, user_bias, item_emb, item_bias


if __name__ == "__main__":
    num_users, num_items, emb_size = 64, 48, 32
    batch = 16

    key = jax.random.PRNGKey(0)
    pkey, ukey, mkey = jax.random.split(key, 3)
    user_emb, user_bias, item_emb, item_bias = init_params(
        pkey, num_users, num_items, emb_size)

    users = jax.random.randint(ukey, (batch,), 0, num_users, dtype=jnp.int32)
    movies = jax.random.randint(mkey, (batch,), 0, num_items, dtype=jnp.int32)

    out = mf_bias_forward(user_emb, user_bias, item_emb, item_bias,
                          users, movies)
    out = jax.block_until_ready(out)

    # pure-JAX reference check
    U = user_emb[users]
    V = item_emb[movies]
    ref = (U * V).sum(1) + user_bias[users, 0] + item_bias[movies, 0]
    assert out.shape == (batch,)
    assert jnp.allclose(out, ref, atol=1e-5), "mismatch vs reference"

    print("KERNEL_OK")
</pallas_src>

<mosaic_0001>
module attributes {stable_mosaic.version = 11 : i64} {
  func.func @mf_bias_kernel(%arg0: i32, %arg1: memref<128xi32, #tpu.memory_space<smem>>, %arg2: memref<128xi32, #tpu.memory_space<smem>>, %arg3: memref<128x1xf32, #tpu.memory_space<vmem>>, %arg4: memref<64x32xf32, #tpu.memory_space<any>>, %arg5: memref<48x32xf32, #tpu.memory_space<any>>, %arg6: memref<128x1xf32, #tpu.memory_space<vmem>>, %arg7: memref<128x32xf32, #tpu.memory_space<vmem>>, %arg8: memref<128x32xf32, #tpu.memory_space<vmem>>, %arg9: memref<8x!tpu.dma_semaphore, #tpu.memory_space<semaphore_mem>>, %arg10: memref<8x!tpu.dma_semaphore, #tpu.memory_space<semaphore_mem>>) attributes {dimension_semantics = [#tpu.dimension_semantics<parallel>], iteration_bounds = array<i64: 1>, scalar_prefetch = 2 : i64, scratch_operands = 4 : i64, tpu.core_type = #tpu.core_type<tc>, window_params = [{transform_indices = @transform_0, window_bounds = array<i64: 128, 1>}, {}, {}, {transform_indices = @transform_3, window_bounds = array<i64: 128, 1>}]} {
    %c128_i32 = arith.constant 128 : i32
    %0 = arith.muli %arg0, %c128_i32 : i32
    %c0_i32 = arith.constant 0 : i32
    %1 = arith.addi %0, %c0_i32 : i32
    %2 = arith.index_cast %1 : i32 to index
    %3 = memref.load %arg1[%2] : memref<128xi32, #tpu.memory_space<smem>>
    %c0_i32_0 = arith.constant 0 : i32
    %4 = arith.addi %0, %c0_i32_0 : i32
    %5 = arith.index_cast %4 : i32 to index
    %6 = memref.load %arg2[%5] : memref<128xi32, #tpu.memory_space<smem>>
    %c0_i32_1 = arith.constant 0 : i32
    %c0_i32_2 = arith.constant 0 : i32
    %7 = tpu.memref_slice %arg4[%3, %c0_i32_2] : memref<64x32xf32, #tpu.memory_space<any>> -> memref<1x32xf32, #tpu.memory_space<any>>
    %c0_i32_3 = arith.constant 0 : i32
    %c0_i32_4 = arith.constant 0 : i32
    %8 = tpu.memref_slice %arg7[%c0_i32_3, %c0_i32_4] : memref<128x32xf32, #tpu.memory_space<vmem>> -> memref<1x32xf32, #tpu.memory_space<vmem>>
    %9 = tpu.memref_slice %arg9[%c0_i32_1] : memref<8x!tpu.dma_semaphore, #tpu.memory_space<semaphore_mem>> -> memref<1x!tpu.dma_semaphore, #tpu.memory_space<semaphore_mem>>
    %10 = tpu.memref_squeeze %9 : memref<1x!tpu.dma_semaphore, #tpu.memory_space<semaphore_mem>> -> memref<!tpu.dma_semaphore, #tpu.memory_space<semaphore_mem>>
    tpu.enqueue_dma source(%7 : memref<1x32xf32, #tpu.memory_space<any>>) target(%8 : memref<1x32xf32, #tpu.memory_space<vmem>>) target_semaphore(%10 : memref<!tpu.dma_semaphore, #tpu.memory_space<semaphore_mem>>)
    %c0_i32_5 = arith.constant 0 : i32
    %c0_i32_6 = arith.constant 0 : i32
    %11 = tpu.memref_slice %arg5[%6, %c0_i32_6] : memref<48x32xf32, #tpu.memory_space<any>> -> memref<1x32xf32, #tpu.memory_space<any>>
    %c0_i32_7 = arith.constant 0 : i32
    %c0_i32_8 = arith.constant 0 : i32
    %12 = tpu.memref_slice %arg8[%c0_i32_7, %c0_i32_8] : memref<128x32xf32, #tpu.memory_space<vmem>> -> memref<1x32xf32, #tpu.memory_space<vmem>>
    %13 = tpu.memref_slice %arg10[%c0_i32_5] : memref<8x!tpu.dma_semaphore, #tpu.memory_space<semaphore_mem>> -> memref<1x!tpu.dma_semaphore, #tpu.memory_space<semaphore_mem>>
    %14 = tpu.memref_squeeze %13 : memref<1x!tpu.dma_semaphore, #tpu.memory_space<semaphore_mem>> -> memref<!tpu.dma_semaphore, #tpu.memory_space<semaphore_mem>>
    tpu.enqueue_dma source(%11 : memref<1x32xf32, #tpu.memory_space<any>>) target(%12 : memref<1x32xf32, #tpu.memory_space<vmem>>) target_semaphore(%14 : memref<!tpu.dma_semaphore, #tpu.memory_space<semaphore_mem>>)
    %c1_i32 = arith.constant 1 : i32
    %15 = arith.addi %0, %c1_i32 : i32
    %16 = arith.index_cast %15 : i32 to index
    %17 = memref.load %arg1[%16] : memref<128xi32, #tpu.memory_space<smem>>
    %c1_i32_9 = arith.constant 1 : i32
    %18 = arith.addi %0, %c1_i32_9 : i32
    %19 = arith.index_cast %18 : i32 to index
    %20 = memref.load %arg2[%19] : memref<128xi32, #tpu.memory_space<smem>>
    %c1_i32_10 = arith.constant 1 : i32
    %c0_i32_11 = arith.constant 0 : i32
    %21 = tpu.memref_slice %arg4[%17, %c0_i32_11] : memref<64x32xf32, #tpu.memory_space<any>> -> memref<1x32xf32, #tpu.memory_space<any>>
    %c1_i32_12 = arith.constant 1 : i32
    %c0_i32_13 = arith.constant 0 : i32
    %22 = tpu.memref_slice %arg7[%c1_i32_12, %c0_i32_13] : memref<128x32xf32, #tpu.memory_space<vmem>> -> memref<1x32xf32, #tpu.memory_space<vmem>>
    %23 = tpu.memref_slice %arg9[%c1_i32_10] : memref<8x!tpu.dma_semaphore, #tpu.memory_space<semaphore_mem>> -> memref<1x!tpu.dma_semaphore, #tpu.memory_space<semaphore_mem>>
    %24 = tpu.memref_squeeze %23 : memref<1x!tpu.dma_semaphore, #tpu.memory_space<semaphore_mem>> -> memref<!tpu.dma_semaphore, #tpu.memory_space<semaphore_mem>>
    tpu.enqueue_dma source(%21 : memref<1x32xf32, #tpu.memory_space<any>>) target(%22 : memref<1x32xf32, #tpu.memory_space<vmem>>) target_semaphore(%24 : memref<!tpu.dma_semaphore, #tpu.memory_space<semaphore_mem>>)
    %c1_i32_14 = arith.constant 1 : i32
    %c0_i32_15 = arith.constant 0 : i32
    %25 = tpu.memref_slice %arg5[%20, %c0_i32_15] : memref<48x32xf32, #tpu.memory_space<any>> -> memref<1x32xf32, #tpu.memory_space<any>>
    %c1_i32_16 = arith.constant 1 : i32
    %c0_i32_17 = arith.constant 0 : i32
    %26 = tpu.memref_slice %arg8[%c1_i32_16, %c0_i32_17] : memref<128x32xf32, #tpu.memory_space<vmem>> -> memref<1x32xf32, #tpu.memory_space<vmem>>
    %27 = tpu.memref_slice %arg10[%c1_i32_14] : memref<8x!tpu.dma_semaphore, #tpu.memory_space<semaphore_mem>> -> memref<1x!tpu.dma_semaphore, #tpu.memory_space<semaphore_mem>>
    %28 = tpu.memref_squeeze %27 : memref<1x!tpu.dma_semaphore, #tpu.memory_space<semaphore_mem>> -> memref<!tpu.dma_semaphore, #tpu.memory_space<semaphore_mem>>
    tpu.enqueue_dma source(%25 : memref<1x32xf32, #tpu.memory_space<any>>) target(%26 : memref<1x32xf32, #tpu.memory_space<vmem>>) target_semaphore(%28 : memref<!tpu.dma_semaphore, #tpu.memory_space<semaphore_mem>>)
    %c2_i32 = arith.constant 2 : i32
    %29 = arith.addi %0, %c2_i32 : i32
    %30 = arith.index_cast %29 : i32 to index
    %31 = memref.load %arg1[%30] : memref<128xi32, #tpu.memory_space<smem>>
    %c2_i32_18 = arith.constant 2 : i32
    %32 = arith.addi %0, %c2_i32_18 : i32
    %33 = arith.index_cast %32 : i32 to index
    %34 = memref.load %arg2[%33] : memref<128xi32, #tpu.memory_space<smem>>
    %c2_i32_19 = arith.constant 2 : i32
    %c0_i32_20 = arith.constant 0 : i32
    %35 = tpu.memref_slice %arg4[%31, %c0_i32_20] : memref<64x32xf32, #tpu.memory_space<any>> -> memref<1x32xf32, #tpu.memory_space<any>>
    %c2_i32_21 = arith.constant 2 : i32
    %c0_i32_22 = arith.constant 0 : i32
    %36 = tpu.memref_slice %arg7[%c2_i32_21, %c0_i32_22] : memref<128x32xf32, #tpu.memory_space<vmem>> -> memref<1x32xf32, #tpu.memory_space<vmem>>
    %37 = tpu.memref_slice %arg9[%c2_i32_19] : memref<8x!tpu.dma_semaphore, #tpu.memory_space<semaphore_mem>> -> memref<1x!tpu.dma_semaphore, #tpu.memory_space<semaphore_mem>>
    %38 = tpu.memref_squeeze %37 : memref<1x!tpu.dma_semaphore, #tpu.memory_space<semaphore_mem>> -> memref<!tpu.dma_semaphore, #tpu.memory_space<semaphore_mem>>
    tpu.enqueue_dma source(%35 : memref<1x32xf32, #tpu.memory_space<any>>) target(%36 : memref<1x32xf32, #tpu.memory_space<vmem>>) target_semaphore(%38 : memref<!tpu.dma_semaphore, #tpu.memory_space<semaphore_mem>>)
    %c2_i32_23 = arith.constant 2 : i32
    %c0_i32_24 = arith.constant 0 : i32
    %39 = tpu.memref_slice %arg5[%34, %c0_i32_24] : memref<48x32xf32, #tpu.memory_space<any>> -> memref<1x32xf32, #tpu.memory_space<any>>
    %c2_i32_25 = arith.constant 2 : i32
    %c0_i32_26 = arith.constant 0 : i32
    %40 = tpu.memref_slice %arg8[%c2_i32_25, %c0_i32_26] : memref<128x32xf32, #tpu.memory_space<vmem>> -> memref<1x32xf32, #tpu.memory_space<vmem>>
    %41 = tpu.memref_slice %arg10[%c2_i32_23] : memref<8x!tpu.dma_semaphore, #tpu.memory_space<semaphore_mem>> -> memref<1x!tpu.dma_semaphore, #tpu.memory_space<semaphore_mem>>
    %42 = tpu.memref_squeeze %41 : memref<1x!tpu.dma_semaphore, #tpu.memory_space<semaphore_mem>> -> memref<!tpu.dma_semaphore, #tpu.memory_space<semaphore_mem>>
    tpu.enqueue_dma source(%39 : memref<1x32xf32, #tpu.memory_space<any>>) target(%40 : memref<1x32xf32, #tpu.memory_space<vmem>>) target_semaphore(%42 : memref<!tpu.dma_semaphore, #tpu.memory_space<semaphore_mem>>)
    %c3_i32 = arith.constant 3 : i32
    %43 = arith.addi %0, %c3_i32 : i32
    %44 = arith.index_cast %43 : i32 to index
    %45 = memref.load %arg1[%44] : memref<128xi32, #tpu.memory_space<smem>>
    %c3_i32_27 = arith.constant 3 : i32
    %46 = arith.addi %0, %c3_i32_27 : i32
    %47 = arith.index_cast %46 : i32 to index
    %48 = memref.load %arg2[%47] : memref<128xi32, #tpu.memory_space<smem>>
    %c3_i32_28 = arith.constant 3 : i32
    %c0_i32_29 = arith.constant 0 : i32
    %49 = tpu.memref_slice %arg4[%45, %c0_i32_29] : memref<64x32xf32, #tpu.memory_space<any>> -> memref<1x32xf32, #tpu.memory_space<any>>
    %c3_i32_30 = arith.constant 3 : i32
    %c0_i32_31 = arith.constant 0 : i32
    %50 = tpu.memref_slice %arg7[%c3_i32_30, %c0_i32_31] : memref<128x32xf32, #tpu.memory_space<vmem>> -> memref<1x32xf32, #tpu.memory_space<vmem>>
    %51 = tpu.memref_slice %arg9[%c3_i32_28] : memref<8x!tpu.dma_semaphore, #tpu.memory_space<semaphore_mem>> -> memref<1x!tpu.dma_semaphore, #tpu.memory_space<semaphore_mem>>
    %52 = tpu.memref_squeeze %51 : memref<1x!tpu.dma_semaphore, #tpu.memory_space<semaphore_mem>> -> memref<!tpu.dma_semaphore, #tpu.memory_space<semaphore_mem>>
    tpu.enqueue_dma source(%49 : memref<1x32xf32, #tpu.memory_space<any>>) target(%50 : memref<1x32xf32, #tpu.memory_space<vmem>>) target_semaphore(%52 : memref<!tpu.dma_semaphore, #tpu.memory_space<semaphore_mem>>)
    %c3_i32_32 = arith.constant 3 : i32
    %c0_i32_33 = arith.constant 0 : i32
    %53 = tpu.memref_slice %arg5[%48, %c0_i32_33] : memref<48x32xf32, #tpu.memory_space<any>> -> memref<1x32xf32, #tpu.memory_space<any>>
    %c3_i32_34 = arith.constant 3 : i32
    %c0_i32_35 = arith.constant 0 : i32
    %54 = tpu.memref_slice %arg8[%c3_i32_34, %c0_i32_35] : memref<128x32xf32, #tpu.memory_space<vmem>> -> memref<1x32xf32, #tpu.memory_space<vmem>>
    %55 = tpu.memref_slice %arg10[%c3_i32_32] : memref<8x!tpu.dma_semaphore, #tpu.memory_space<semaphore_mem>> -> memref<1x!tpu.dma_semaphore, #tpu.memory_space<semaphore_mem>>
    %56 = tpu.memref_squeeze %55 : memref<1x!tpu.dma_semaphore, #tpu.memory_space<semaphore_mem>> -> memref<!tpu.dma_semaphore, #tpu.memory_space<semaphore_mem>>
    tpu.enqueue_dma source(%53 : memref<1x32xf32, #tpu.memory_space<any>>) target(%54 : memref<1x32xf32, #tpu.memory_space<vmem>>) target_semaphore(%56 : memref<!tpu.dma_semaphore, #tpu.memory_space<semaphore_mem>>)
    %c4_i32 = arith.constant 4 : i32
    %57 = arith.addi %0, %c4_i32 : i32
    %58 = arith.index_cast %57 : i32 to index
    %59 = memref.load %arg1[%58] : memref<128xi32, #tpu.memory_space<smem>>
    %c4_i32_36 = arith.constant 4 : i32
    %60 = arith.addi %0, %c4_i32_36 : i32
    %61 = arith.index_cast %60 : i32 to index
    %62 = memref.load %arg2[%61] : memref<128xi32, #tpu.memory_space<smem>>
    %c4_i32_37 = arith.constant 4 : i32
    %c0_i32_38 = arith.constant 0 : i32
    %63 = tpu.memref_slice %arg4[%59, %c0_i32_38] : memref<64x32xf32, #tpu.memory_space<any>> -> memref<1x32xf32, #tpu.memory_space<any>>
    %c4_i32_39 = arith.constant 4 : i32
    %c0_i32_40 = arith.constant 0 : i32
    %64 = tpu.memref_slice %arg7[%c4_i32_39, %c0_i32_40] : memref<128x32xf32, #tpu.memory_space<vmem>> -> memref<1x32xf32, #tpu.memory_space<vmem>>
    %65 = tpu.memref_slice %arg9[%c4_i32_37] : memref<8x!tpu.dma_semaphore, #tpu.memory_space<semaphore_mem>> -> memref<1x!tpu.dma_semaphore, #tpu.memory_space<semaphore_mem>>
    %66 = tpu.memref_squeeze %65 : memref<1x!tpu.dma_semaphore, #tpu.memory_space<semaphore_mem>> -> memref<!tpu.dma_semaphore, #tpu.memory_space<semaphore_mem>>
    tpu.enqueue_dma source(%63 : memref<1x32xf32, #tpu.memory_space<any>>) target(%64 : memref<1x32xf32, #tpu.memory_space<vmem>>) target_semaphore(%66 : memref<!tpu.dma_semaphore, #tpu.memory_space<semaphore_mem>>)
    %c4_i32_41 = arith.constant 4 : i32
    %c0_i32_42 = arith.constant 0 : i32
    %67 = tpu.memref_slice %arg5[%62, %c0_i32_42] : memref<48x32xf32, #tpu.memory_space<any>> -> memref<1x32xf32, #tpu.memory_space<any>>
    %c4_i32_43 = arith.constant 4 : i32
    %c0_i32_44 = arith.constant 0 : i32
    %68 = tpu.memref_slice %arg8[%c4_i32_43, %c0_i32_44] : memref<128x32xf32, #tpu.memory_space<vmem>> -> memref<1x32xf32, #tpu.memory_space<vmem>>
    %69 = tpu.memref_slice %arg10[%c4_i32_41] : memref<8x!tpu.dma_semaphore, #tpu.memory_space<semaphore_mem>> -> memref<1x!tpu.dma_semaphore, #tpu.memory_space<semaphore_mem>>
    %70 = tpu.memref_squeeze %69 : memref<1x!tpu.dma_semaphore, #tpu.memory_space<semaphore_mem>> -> memref<!tpu.dma_semaphore, #tpu.memory_space<semaphore_mem>>
    tpu.enqueue_dma source(%67 : memref<1x32xf32, #tpu.memory_space<any>>) target(%68 : memref<1x32xf32, #tpu.memory_space<vmem>>) target_semaphore(%70 : memref<!tpu.dma_semaphore, #tpu.memory_space<semaphore_mem>>)
    %c5_i32 = arith.constant 5 : i32
    %71 = arith.addi %0, %c5_i32 : i32
    %72 = arith.index_cast %71 : i32 to index
    %73 = memref.load %arg1[%72] : memref<128xi32, #tpu.memory_space<smem>>
    %c5_i32_45 = arith.constant 5 : i32
    %74 = arith.addi %0, %c5_i32_45 : i32
    %75 = arith.index_cast %74 : i32 to index
    %76 = memref.load %arg2[%75] : memref<128xi32, #tpu.memory_space<smem>>
    %c5_i32_46 = arith.constant 5 : i32
    %c0_i32_47 = arith.constant 0 : i32
    %77 = tpu.memref_slice %arg4[%73, %c0_i32_47] : memref<64x32xf32, #tpu.memory_space<any>> -> memref<1x32xf32, #tpu.memory_space<any>>
    %c5_i32_48 = arith.constant 5 : i32
    %c0_i32_49 = arith.constant 0 : i32
    %78 = tpu.memref_slice %arg7[%c5_i32_48, %c0_i32_49] : memref<128x32xf32, #tpu.memory_space<vmem>> -> memref<1x32xf32, #tpu.memory_space<vmem>>
    %79 = tpu.memref_slice %arg9[%c5_i32_46] : memref<8x!tpu.dma_semaphore, #tpu.memory_space<semaphore_mem>> -> memref<1x!tpu.dma_semaphore, #tpu.memory_space<semaphore_mem>>
    %80 = tpu.memref_squeeze %79 : memref<1x!tpu.dma_semaphore, #tpu.memory_space<semaphore_mem>> -> memref<!tpu.dma_semaphore, #tpu.memory_space<semaphore_mem>>
    tpu.enqueue_dma source(%77 : memref<1x32xf32, #tpu.memory_space<any>>) target(%78 : memref<1x32xf32, #tpu.memory_space<vmem>>) target_semaphore(%80 : memref<!tpu.dma_semaphore, #tpu.memory_space<semaphore_mem>>)
    %c5_i32_50 = arith.constant 5 : i32
    %c0_i32_51 = arith.constant 0 : i32
    %81 = tpu.memref_slice %arg5[%76, %c0_i32_51] : memref<48x32xf32, #tpu.memory_space<any>> -> memref<1x32xf32, #tpu.memory_space<any>>
    %c5_i32_52 = arith.constant 5 : i32
    %c0_i32_53 = arith.constant 0 : i32
    %82 = tpu.memref_slice %arg8[%c5_i32_52, %c0_i32_53] : memref<128x32xf32, #tpu.memory_space<vmem>> -> memref<1x32xf32, #tpu.memory_space<vmem>>
    %83 = tpu.memref_slice %arg10[%c5_i32_50] : memref<8x!tpu.dma_semaphore, #tpu.memory_space<semaphore_mem>> -> memref<1x!tpu.dma_semaphore, #tpu.memory_space<semaphore_mem>>
    %84 = tpu.memref_squeeze %83 : memref<1x!tpu.dma_semaphore, #tpu.memory_space<semaphore_mem>> -> memref<!tpu.dma_semaphore, #tpu.memory_space<semaphore_mem>>
    tpu.enqueue_dma source(%81 : memref<1x32xf32, #tpu.memory_space<any>>) target(%82 : memref<1x32xf32, #tpu.memory_space<vmem>>) target_semaphore(%84 : memref<!tpu.dma_semaphore, #tpu.memory_space<semaphore_mem>>)
    %c6_i32 = arith.constant 6 : i32
    %85 = arith.addi %0, %c6_i32 : i32
    %86 = arith.index_cast %85 : i32 to index
    %87 = memref.load %arg1[%86] : memref<128xi32, #tpu.memory_space<smem>>
    %c6_i32_54 = arith.constant 6 : i32
    %88 = arith.addi %0, %c6_i32_54 : i32
    %89 = arith.index_cast %88 : i32 to index
    %90 = memref.load %arg2[%89] : memref<128xi32, #tpu.memory_space<smem>>
    %c6_i32_55 = arith.constant 6 : i32
    %c0_i32_56 = arith.constant 0 : i32
    %91 = tpu.memref_slice %arg4[%87, %c0_i32_56] : memref<64x32xf32, #tpu.memory_space<any>> -> memref<1x32xf32, #tpu.memory_space<any>>
    %c6_i32_57 = arith.constant 6 : i32
    %c0_i32_58 = arith.constant 0 : i32
    %92 = tpu.memref_slice %arg7[%c6_i32_57, %c0_i32_58] : memref<128x32xf32, #tpu.memory_space<vmem>> -> memref<1x32xf32, #tpu.memory_space<vmem>>
    %93 = tpu.memref_slice %arg9[%c6_i32_55] : memref<8x!tpu.dma_semaphore, #tpu.memory_space<semaphore_mem>> -> memref<1x!tpu.dma_semaphore, #tpu.memory_space<semaphore_mem>>
    %94 = tpu.memref_squeeze %93 : memref<1x!tpu.dma_semaphore, #tpu.memory_space<semaphore_mem>> -> memref<!tpu.dma_semaphore, #tpu.memory_space<semaphore_mem>>
    tpu.enqueue_dma source(%91 : memref<1x32xf32, #tpu.memory_space<any>>) target(%92 : memref<1x32xf32, #tpu.memory_space<vmem>>) target_semaphore(%94 : memref<!tpu.dma_semaphore, #tpu.memory_space<semaphore_mem>>)
    %c6_i32_59 = arith.constant 6 : i32
    %c0_i32_60 = arith.constant 0 : i32
    %95 = tpu.memref_slice %arg5[%90, %c0_i32_60] : memref<48x32xf32, #tpu.memory_space<any>> -> memref<1x32xf32, #tpu.memory_space<any>>
    %c6_i32_61 = arith.constant 6 : i32
    %c0_i32_62 = arith.constant 0 : i32
    %96 = tpu.memref_slice %arg8[%c6_i32_61, %c0_i32_62] : memref<128x32xf32, #tpu.memory_space<vmem>> -> memref<1x32xf32, #tpu.memory_space<vmem>>
    %97 = tpu.memref_slice %arg10[%c6_i32_59] : memref<8x!tpu.dma_semaphore, #tpu.memory_space<semaphore_mem>> -> memref<1x!tpu.dma_semaphore, #tpu.memory_space<semaphore_mem>>
    %98 = tpu.memref_squeeze %97 : memref<1x!tpu.dma_semaphore, #tpu.memory_space<semaphore_mem>> -> memref<!tpu.dma_semaphore, #tpu.memory_space<semaphore_mem>>
    tpu.enqueue_dma source(%95 : memref<1x32xf32, #tpu.memory_space<any>>) target(%96 : memref<1x32xf32, #tpu.memory_space<vmem>>) target_semaphore(%98 : memref<!tpu.dma_semaphore, #tpu.memory_space<semaphore_mem>>)
    %c7_i32 = arith.constant 7 : i32
    %99 = arith.addi %0, %c7_i32 : i32
    %100 = arith.index_cast %99 : i32 to index
    %101 = memref.load %arg1[%100] : memref<128xi32, #tpu.memory_space<smem>>
    %c7_i32_63 = arith.constant 7 : i32
    %102 = arith.addi %0, %c7_i32_63 : i32
    %103 = arith.index_cast %102 : i32 to index
    %104 = memref.load %arg2[%103] : memref<128xi32, #tpu.memory_space<smem>>
    %c7_i32_64 = arith.constant 7 : i32
    %c0_i32_65 = arith.constant 0 : i32
    %105 = tpu.memref_slice %arg4[%101, %c0_i32_65] : memref<64x32xf32, #tpu.memory_space<any>> -> memref<1x32xf32, #tpu.memory_space<any>>
    %c7_i32_66 = arith.constant 7 : i32
    %c0_i32_67 = arith.constant 0 : i32
    %106 = tpu.memref_slice %arg7[%c7_i32_66, %c0_i32_67] : memref<128x32xf32, #tpu.memory_space<vmem>> -> memref<1x32xf32, #tpu.memory_space<vmem>>
    %107 = tpu.memref_slice %arg9[%c7_i32_64] : memref<8x!tpu.dma_semaphore, #tpu.memory_space<semaphore_mem>> -> memref<1x!tpu.dma_semaphore, #tpu.memory_space<semaphore_mem>>
    %108 = tpu.memref_squeeze %107 : memref<1x!tpu.dma_semaphore, #tpu.memory_space<semaphore_mem>> -> memref<!tpu.dma_semaphore, #tpu.memory_space<semaphore_mem>>
    tpu.enqueue_dma source(%105 : memref<1x32xf32, #tpu.memory_space<any>>) target(%106 : memref<1x32xf32, #tpu.memory_space<vmem>>) target_semaphore(%108 : memref<!tpu.dma_semaphore, #tpu.memory_space<semaphore_mem>>)
    %c7_i32_68 = arith.constant 7 : i32
    %c0_i32_69 = arith.constant 0 : i32
    %109 = tpu.memref_slice %arg5[%104, %c0_i32_69] : memref<48x32xf32, #tpu.memory_space<any>> -> memref<1x32xf32, #tpu.memory_space<any>>
    %c7_i32_70 = arith.constant 7 : i32
    %c0_i32_71 = arith.constant 0 : i32
    %110 = tpu.memref_slice %arg8[%c7_i32_70, %c0_i32_71] : memref<128x32xf32, #tpu.memory_space<vmem>> -> memref<1x32xf32, #tpu.memory_space<vmem>>
    %111 = tpu.memref_slice %arg10[%c7_i32_68] : memref<8x!tpu.dma_semaphore, #tpu.memory_space<semaphore_mem>> -> memref<1x!tpu.dma_semaphore, #tpu.memory_space<semaphore_mem>>
    %112 = tpu.memref_squeeze %111 : memref<1x!tpu.dma_semaphore, #tpu.memory_space<semaphore_mem>> -> memref<!tpu.dma_semaphore, #tpu.memory_space<semaphore_mem>>
    tpu.enqueue_dma source(%109 : memref<1x32xf32, #tpu.memory_space<any>>) target(%110 : memref<1x32xf32, #tpu.memory_space<vmem>>) target_semaphore(%112 : memref<!tpu.dma_semaphore, #tpu.memory_space<semaphore_mem>>)
    %c0_i32_72 = arith.constant 0 : i32
    %c128_i32_73 = arith.constant 128 : i32
    %113 = arith.addi %c0_i32_72, %c128_i32_73 : i32
    %c1_i32_74 = arith.constant 1 : i32
    scf.for %arg11 = %c0_i32_72 to %113 step %c1_i32_74  : i32 {
      %c8_i32 = arith.constant 8 : i32
      %c0_i32_82 = arith.constant 0 : i32
      %128 = arith.cmpi eq, %c8_i32, %c0_i32_82 : i32
      %c1_i32_83 = arith.constant 1 : i32
      %129 = arith.select %128, %c1_i32_83, %c8_i32 : i32
      %130 = arith.remsi %arg11, %129 : i32
      %c0_i32_84 = arith.constant 0 : i32
      %131 = arith.cmpi ne, %130, %c0_i32_84 : i32
      %c0_i32_85 = arith.constant 0 : i32
      %132 = arith.cmpi slt, %130, %c0_i32_85 : i32
      %c0_i32_86 = arith.constant 0 : i32
      %133 = arith.cmpi slt, %129, %c0_i32_86 : i32
      %134 = arith.xori %132, %133 : i1
      %135 = arith.andi %134, %131 : i1
      %136 = arith.addi %130, %129 : i32
      %137 = arith.select %135, %136, %130 : i32
      %c0_i32_87 = arith.constant 0 : i32
      %c0_i32_88 = arith.constant 0 : i32
      %138 = tpu.memref_slice %arg4[%c0_i32_87, %c0_i32_88] : memref<64x32xf32, #tpu.memory_space<any>> -> memref<1x32xf32, #tpu.memory_space<any>>
      %c0_i32_89 = arith.constant 0 : i32
      %139 = tpu.memref_slice %arg7[%arg11, %c0_i32_89] : memref<128x32xf32, #tpu.memory_space<vmem>> -> memref<1x32xf32, #tpu.memory_space<vmem>>
      %140 = tpu.memref_slice %arg9[%137] : memref<8x!tpu.dma_semaphore, #tpu.memory_space<semaphore_mem>> -> memref<1x!tpu.dma_semaphore, #tpu.memory_space<semaphore_mem>>
      %141 = tpu.memref_squeeze %140 : memref<1x!tpu.dma_semaphore, #tpu.memory_space<semaphore_mem>> -> memref<!tpu.dma_semaphore, #tpu.memory_space<semaphore_mem>>
      tpu.wait_dma2 semaphore(%141 : memref<!tpu.dma_semaphore, #tpu.memory_space<semaphore_mem>>) src(%138 : memref<1x32xf32, #tpu.memory_space<any>>) dst(%139 : memref<1x32xf32, #tpu.memory_space<vmem>>)
      %c0_i32_90 = arith.constant 0 : i32
      %c0_i32_91 = arith.constant 0 : i32
      %142 = tpu.memref_slice %arg5[%c0_i32_90, %c0_i32_91] : memref<48x32xf32, #tpu.memory_space<any>> -> memref<1x32xf32, #tpu.memory_space<any>>
      %c0_i32_92 = arith.constant 0 : i32
      %143 = tpu.memref_slice %arg8[%arg11, %c0_i32_92] : memref<128x32xf32, #tpu.memory_space<vmem>> -> memref<1x32xf32, #tpu.memory_space<vmem>>
      %144 = tpu.memref_slice %arg10[%137] : memref<8x!tpu.dma_semaphore, #tpu.memory_space<semaphore_mem>> -> memref<1x!tpu.dma_semaphore, #tpu.memory_space<semaphore_mem>>
      %145 = tpu.memref_squeeze %144 : memref<1x!tpu.dma_semaphore, #tpu.memory_space<semaphore_mem>> -> memref<!tpu.dma_semaphore, #tpu.memory_space<semaphore_mem>>
      tpu.wait_dma2 semaphore(%145 : memref<!tpu.dma_semaphore, #tpu.memory_space<semaphore_mem>>) src(%142 : memref<1x32xf32, #tpu.memory_space<any>>) dst(%143 : memref<1x32xf32, #tpu.memory_space<vmem>>)
      %c8_i32_93 = arith.constant 8 : i32
      %146 = arith.addi %arg11, %c8_i32_93 : i32
      %c128_i32_94 = arith.constant 128 : i32
      %147 = arith.cmpi slt, %146, %c128_i32_94 : i32
      %148 = arith.extui %147 : i1 to i32
      %c0_i32_95 = arith.constant 0 : i32
      %149 = arith.cmpi ne, %148, %c0_i32_95 : i32
      scf.if %149 {
        %c8_i32_96 = arith.constant 8 : i32
        %150 = arith.addi %arg11, %c8_i32_96 : i32
        %151 = arith.addi %0, %150 : i32
        %152 = arith.index_cast %151 : i32 to index
        %153 = memref.load %arg1[%152] : memref<128xi32, #tpu.memory_space<smem>>
        %154 = arith.addi %0, %150 : i32
        %155 = arith.index_cast %154 : i32 to index
        %156 = memref.load %arg2[%155] : memref<128xi32, #tpu.memory_space<smem>>
        %c0_i32_97 = arith.constant 0 : i32
        %157 = tpu.memref_slice %arg4[%153, %c0_i32_97] : memref<64x32xf32, #tpu.memory_space<any>> -> memref<1x32xf32, #tpu.memory_space<any>>
        %c0_i32_98 = arith.constant 0 : i32
        %158 = tpu.memref_slice %arg7[%150, %c0_i32_98] : memref<128x32xf32, #tpu.memory_space<vmem>> -> memref<1x32xf32, #tpu.memory_space<vmem>>
        %159 = tpu.memref_slice %arg9[%137] : memref<8x!tpu.dma_semaphore, #tpu.memory_space<semaphore_mem>> -> memref<1x!tpu.dma_semaphore, #tpu.memory_space<semaphore_mem>>
        %160 = tpu.memref_squeeze %159 : memref<1x!tpu.dma_semaphore, #tpu.memory_space<semaphore_mem>> -> memref<!tpu.dma_semaphore, #tpu.memory_space<semaphore_mem>>
        tpu.enqueue_dma source(%157 : memref<1x32xf32, #tpu.memory_space<any>>) target(%158 : memref<1x32xf32, #tpu.memory_space<vmem>>) target_semaphore(%160 : memref<!tpu.dma_semaphore, #tpu.memory_space<semaphore_mem>>)
        %c0_i32_99 = arith.constant 0 : i32
        %161 = tpu.memref_slice %arg5[%156, %c0_i32_99] : memref<48x32xf32, #tpu.memory_space<any>> -> memref<1x32xf32, #tpu.memory_space<any>>
        %c0_i32_100 = arith.constant 0 : i32
        %162 = tpu.memref_slice %arg8[%150, %c0_i32_100] : memref<128x32xf32, #tpu.memory_space<vmem>> -> memref<1x32xf32, #tpu.memory_space<vmem>>
        %163 = tpu.memref_slice %arg10[%137] : memref<8x!tpu.dma_semaphore, #tpu.memory_space<semaphore_mem>> -> memref<1x!tpu.dma_semaphore, #tpu.memory_space<semaphore_mem>>
        %164 = tpu.memref_squeeze %163 : memref<1x!tpu.dma_semaphore, #tpu.memory_space<semaphore_mem>> -> memref<!tpu.dma_semaphore, #tpu.memory_space<semaphore_mem>>
        tpu.enqueue_dma source(%161 : memref<1x32xf32, #tpu.memory_space<any>>) target(%162 : memref<1x32xf32, #tpu.memory_space<vmem>>) target_semaphore(%164 : memref<!tpu.dma_semaphore, #tpu.memory_space<semaphore_mem>>)
      } else {
      }
    }
    %c128_i32_75 = arith.constant 128 : i32
    %c0_i32_76 = arith.constant 0 : i32
    %c128_i32_77 = arith.constant 128 : i32
    %114 = arith.muli %c0_i32_76, %c128_i32_77 : i32
    %115 = tpu.assume_multiple %114, 128 : i32
    %116 = arith.index_cast %115 : i32 to index
    %c0 = arith.constant 0 : index
    %117 = vector.load %arg7[%116, %c0] : memref<128x32xf32, #tpu.memory_space<vmem>>, vector<128x32xf32>
    %118 = arith.index_cast %115 : i32 to index
    %c0_78 = arith.constant 0 : index
    %119 = vector.load %arg8[%118, %c0_78] : memref<128x32xf32, #tpu.memory_space<vmem>>, vector<128x32xf32>
    %120 = arith.mulf %117, %119 : vector<128x32xf32>
    %cst = arith.constant dense<0.000000e+00> : vector<128xf32>
    %121 = vector.multi_reduction <add>, %120, %cst [1] : vector<128x32xf32> to vector<128xf32>
    %122 = vector.shape_cast %121 : vector<128xf32> to vector<128x1xf32>
    %123 = arith.index_cast %115 : i32 to index
    %c0_79 = arith.constant 0 : index
    %124 = vector.load %arg3[%123, %c0_79] : memref<128x1xf32, #tpu.memory_space<vmem>>, vector<128x1xf32>
    %125 = arith.addf %122, %124 : vector<128x1xf32>
    %126 = arith.index_cast %115 : i32 to index
    %c0_80 = arith.constant 0 : index
    %127 = vector.load %arg6[%126, %c0_80] : memref<128x1xf32, #tpu.memory_space<vmem>>, vector<128x1xf32>
    tpu.vector_store %arg6[%126, %c0_80], %125 {strides = array<i32>} : memref<128x1xf32, #tpu.memory_space<vmem>>, vector<128x1xf32>,
    %c1_i32_81 = arith.constant 1 : i32
    return
  }
  func.func @transform_0(%arg0: i32, %arg1: memref<128xi32, #tpu.memory_space<smem>>, %arg2: memref<128xi32, #tpu.memory_space<smem>>) -> (i32, i32) {
    %c0_i32 = arith.constant 0 : i32
    %c0_i32_0 = arith.constant 0 : i32
    return %arg0, %c0_i32 : i32, i32
  }
  func.func @transform_3(%arg0: i32, %arg1: memref<128xi32, #tpu.memory_space<smem>>, %arg2: memref<128xi32, #tpu.memory_space<smem>>) -> (i32, i32) {
    %c0_i32 = arith.constant 0 : i32
    %c0_i32_0 = arith.constant 0 : i32
    return %arg0, %c0_i32 : i32, i32
  }
}

</mosaic_0001>

<llo_original>
// kernel: tpu_custom_call.1
$region0: #{tpu_custom_call.1}
  #allocation0 [shape = 'u32[]', space=smem, size = 0x4, offset = 0x4, fixed_abs, tag = 'smem constant byte address 0x4 - core index']
  #allocation1 [shape = 'u32[72,128]{1,0:T(1,128)}', space=vmem, size = 0x9000, scoped, tag = 'internal scratch']
  #allocation2 [shape = 'f32[128,32]{1,0:T(8,128)}', space=vmem, size = 0x10000, scoped, tag = 'scratch operand']
  #allocation3 [shape = 'f32[128,32]{1,0:T(8,128)}', space=vmem, size = 0x10000, scoped, tag = 'scratch operand']
  #allocation4 [shape = 's32[8]{0}', space=sflag, size = 0x20, scoped, tag = 'scratch operand']
  #allocation5 [shape = 's32[8]{0}', space=sflag, size = 0x20, scoped, tag = 'scratch operand']
  #allocation6 [shape = 's32[1]{0}', space=sflag, size = 0x4, scoped, tag = 'scoped memory for tpu_custom_call.1']
  #allocation7 [shape = 'u8[512]{0}', space=smem, size = 0x200, scoped, tag = 'prefetched SMEM operand 0']
  #allocation8 [shape = 'u8[512]{0}', space=smem, size = 0x200, scoped, tag = 'prefetched SMEM operand 1']
  #allocation9 [shape = 's32[]', space=sflag, size = 0x4, offset = 0, fixed_abs, tag = 'sflag constant byte address 0x0 - dummy sync flag']
  #allocation10 [shape = 's32[]', space=sflag, size = 0x4, offset = 0, fixed_abs, tag = 'sflag constant byte address 0x0 - dummy sync flag']
  #allocation11 [shape = 's32[]', space=sflag, size = 0x4, offset = 0, fixed_abs, tag = 'sflag constant byte address 0x0 - dummy sync flag']
  #allocation12 [shape = 's32[]', space=sflag, size = 0x4, offset = 0, fixed_abs, tag = 'sflag constant byte address 0x0 - dummy sync flag']
  #allocation13 [shape = 's32[]', space=sflag, size = 0x4, offset = 0, fixed_abs, tag = 'sflag constant byte address 0x0 - dummy sync flag']
  #allocation14 [shape = 's32[]', space=sflag, size = 0x4, offset = 0, fixed_abs, tag = 'sflag constant byte address 0x0 - dummy sync flag']
  #allocation15 [shape = 's32[]', space=sflag, size = 0x4, offset = 0, fixed_abs, tag = 'sflag constant byte address 0x0 - dummy sync flag']
  #allocation16 [shape = 's32[]', space=sflag, size = 0x4, offset = 0, fixed_abs, tag = 'sflag constant byte address 0x0 - dummy sync flag']
  #allocation17 [shape = 's32[]', space=sflag, size = 0x4, offset = 0, fixed_abs, tag = 'sflag constant byte address 0x0 - dummy sync flag']
  #allocation18 [shape = 's32[]', space=sflag, size = 0x4, offset = 0, fixed_abs, tag = 'sflag constant byte address 0x0 - dummy sync flag']
  #allocation19 [shape = 's32[]', space=sflag, size = 0x4, offset = 0, fixed_abs, tag = 'sflag constant byte address 0x0 - dummy sync flag']
  #allocation20 [shape = 's32[]', space=sflag, size = 0x4, offset = 0, fixed_abs, tag = 'sflag constant byte address 0x0 - dummy sync flag']
  #allocation21 [shape = 's32[]', space=sflag, size = 0x4, offset = 0, fixed_abs, tag = 'sflag constant byte address 0x0 - dummy sync flag']
  #allocation22 [shape = 's32[]', space=sflag, size = 0x4, offset = 0, fixed_abs, tag = 'sflag constant byte address 0x0 - dummy sync flag']
  #allocation23 [shape = 's32[]', space=sflag, size = 0x4, offset = 0, fixed_abs, tag = 'sflag constant byte address 0x0 - dummy sync flag']
  #allocation24 [shape = 's32[]', space=sflag, size = 0x4, offset = 0, fixed_abs, tag = 'sflag constant byte address 0x0 - dummy sync flag']
  #allocation25 [shape = 's32[]', space=sflag, size = 0x4, offset = 0, fixed_abs, tag = 'sflag constant byte address 0x0 - dummy sync flag']
  #allocation26 [shape = 's32[]', space=sflag, size = 0x4, offset = 0, fixed_abs, tag = 'sflag constant byte address 0x0 - dummy sync flag']
  %s0 = inlined_call_operand.vmem [shape: s32[128], index: 0, kind: input, shape index: {}]
  %s1 = inlined_call_operand.vmem [shape: s32[128], index: 1, kind: input, shape index: {}]
  %s2 = inlined_call_operand.vmem [shape: f32[128,1], index: 2, kind: input, shape index: {}]
  %s3 = inlined_call_operand.vmem [shape: f32[64,32], index: 3, kind: input, shape index: {}]
  %s4 = inlined_call_operand.vmem [shape: f32[48,32], index: 4, kind: input, shape index: {}]
  %s5 = inlined_call_operand.vmem [shape: f32[128,1], index: 5, kind: output, shape index: {}]
  %s6 = sld [smem:[#allocation0]]
  $region565: #{tpu_custom_call.1} parent=0
    _
  %s8 = ssub.s32 1, %s6
  %s9 = scalar_select 0, %s8, %s6
  %s11 = sshll.u32 %s0, 4
  %s12 = int_to_ptr.vmem [resolvable:$true] %s11
  %14 = dma.vmem_to_smem %s12, 16, [#allocation7], [#allocation6]
  %s16 = sshll.u32 %s1, 4
  %s17 = int_to_ptr.vmem [resolvable:$true] %s16
  %19 = dma.vmem_to_smem %s17, 16, [#allocation8], [#allocation6]
  %21 = dma.done [#allocation6], 32
  %22 = sfence
  // Predicated region
  $region2: #{tpu_custom_call.1} parent=0 // pred_check
    _
  $region3: #{tpu_custom_call.1} parent=0 // pred_check_branch
    %24 = sbr.rel (0) target = $region5
  $region4: #{tpu_custom_call.1} parent=0 // pred_region
    _
  $region5: #{tpu_custom_call.1} parent=0 // pred_fallthru
    _
  %s25 = smul.u32 0, 128
  %s26 = sld [smem:[#allocation7 + %s25]]
  %s27 = sld [smem:[#allocation8 + %s25]]
  %s28 = scalar_lea.vmem %s3, %s26
  // Predicated region
  $region6: #{tpu_custom_call.1} parent=0 // pred_check
    _
  $region7: #{tpu_custom_call.1} parent=0 // pred_check_branch
    %30 = sbr.rel target = $region9
  $region8: #{tpu_custom_call.1} parent=0 // pred_region
    // Predicated region
    $region21: #{tpu_custom_call.1} parent=8 // pred_check
      _
    $region22: #{tpu_custom_call.1} parent=8 // pred_check_branch
      %46 = sbr.rel (0) target = $region24
    $region23: #{tpu_custom_call.1} parent=8 // pred_region
      %s48 = ssub.s32 2, 1
      loop: start=0, step=1, limit=1
      $region25: #{tpu_custom_call.1} parent=23 // loop_pre_header
        _
      $region26: #{tpu_custom_call.1} parent=23 // loop_header
        %s50 = sphi 0, %s54
        %p51 = scmp.ge.s32.totalorder %s50, 1
        %s55 = sphi %s28, %s28
        %s56 = sphi [#allocation2], [#allocation2]
      $region27: #{tpu_custom_call.1} parent=23 // loop_header_branch
        %53 = sbr.rel (%p51) target = $region31
      $region28: #{tpu_custom_call.1} parent=23 // loop_body
        %v57 = vld [vmem:[%s55] sm:%s48]
        %58 = vst [vmem:[%s56] sm:%s48] %v57
      $region29: #{tpu_custom_call.1} parent=23 // loop_footer
        %s54 = sadd.s32 1, %s50
      $region30: #{tpu_custom_call.1} parent=23 // loop_footer_branch
        %49 = sbr.rel target = $region26
      $region31: #{tpu_custom_call.1} parent=23 // loop_exit
        _
    $region24: #{tpu_custom_call.1} parent=8 // pred_fallthru
      _
  $region9: #{tpu_custom_call.1} parent=0 // pred_fallthru
    _
  // Predicated region
  $region10: #{tpu_custom_call.1} parent=0 // pred_check
    _
  $region11: #{tpu_custom_call.1} parent=0 // pred_check_branch
    %32 = sbr.rel (0) target = $region13
  $region12: #{tpu_custom_call.1} parent=0 // pred_region
    %s34 = ssub.s32 2, 1
    loop: start=0, step=1, limit=1
    $region14: #{tpu_custom_call.1} parent=12 // loop_pre_header
      _
    $region15: #{tpu_custom_call.1} parent=12 // loop_header
      %s36 = sphi 0, %s40
      %p37 = scmp.ge.s32.totalorder %s36, 1
      %s41 = sphi %s28, %s28
      %s42 = sphi [#allocation2], [#allocation2]
    $region16: #{tpu_custom_call.1} parent=12 // loop_header_branch
      %39 = sbr.rel (%p37) target = $region20
    $region17: #{tpu_custom_call.1} parent=12 // loop_body
      %v43 = vld [vmem:[%s41] sm:%s34]
      %44 = vst [vmem:[%s42] sm:%s34] %v43
    $region18: #{tpu_custom_call.1} parent=12 // loop_footer
      %s40 = sadd.s32 1, %s36
    $region19: #{tpu_custom_call.1} parent=12 // loop_footer_branch
      %35 = sbr.rel target = $region15
    $region20: #{tpu_custom_call.1} parent=12 // loop_exit
      _
  $region13: #{tpu_custom_call.1} parent=0 // pred_fallthru
    _
  // Predicated region
  $region32: #{tpu_custom_call.1} parent=0 // pred_check
    _
  $region33: #{tpu_custom_call.1} parent=0 // pred_check_branch
    %61 = sbr.rel (0) target = $region35
  $region34: #{tpu_custom_call.1} parent=0 // pred_region
    %62 = vsyncadd [#allocation4], 16
  $region35: #{tpu_custom_call.1} parent=0 // pred_fallthru
    _
  %s63 = scalar_lea.vmem %s4, %s27
  // Predicated region
  $region36: #{tpu_custom_call.1} parent=0 // pred_check
    _
  $region37: #{tpu_custom_call.1} parent=0 // pred_check_branch
    %65 = sbr.rel target = $region39
  $region38: #{tpu_custom_call.1} parent=0 // pred_region
    // Predicated region
    $region51: #{tpu_custom_call.1} parent=38 // pred_check
      _
    $region52: #{tpu_custom_call.1} parent=38 // pred_check_branch
      %81 = sbr.rel (0) target = $region54
    $region53: #{tpu_custom_call.1} parent=38 // pred_region
      %s83 = ssub.s32 2, 1
      loop: start=0, step=1, limit=1
      $region55: #{tpu_custom_call.1} parent=53 // loop_pre_header
        _
      $region56: #{tpu_custom_call.1} parent=53 // loop_header
        %s85 = sphi 0, %s89
        %p86 = scmp.ge.s32.totalorder %s85, 1
        %s90 = sphi %s63, %s63
        %s91 = sphi [#allocation3], [#allocation3]
      $region57: #{tpu_custom_call.1} parent=53 // loop_header_branch
        %88 = sbr.rel (%p86) target = $region61
      $region58: #{tpu_custom_call.1} parent=53 // loop_body
        %v92 = vld [vmem:[%s90] sm:%s83]
        %93 = vst [vmem:[%s91] sm:%s83] %v92
      $region59: #{tpu_custom_call.1} parent=53 // loop_footer
        %s89 = sadd.s32 1, %s85
      $region60: #{tpu_custom_call.1} parent=53 // loop_footer_branch
        %84 = sbr.rel target = $region56
      $region61: #{tpu_custom_call.1} parent=53 // loop_exit
        _
    $region54: #{tpu_custom_call.1} parent=38 // pred_fallthru
      _
  $region39: #{tpu_custom_call.1} parent=0 // pred_fallthru
    _
  // Predicated region
  $region40: #{tpu_custom_call.1} parent=0 // pred_check
    _
  $region41: #{tpu_custom_call.1} parent=0 // pred_check_branch
    %67 = sbr.rel (0) target = $region43
  $region42: #{tpu_custom_call.1} parent=0 // pred_region
    %s69 = ssub.s32 2, 1
    loop: start=0, step=1, limit=1
    $region44: #{tpu_custom_call.1} parent=42 // loop_pre_header
      _
    $region45: #{tpu_custom_call.1} parent=42 // loop_header
      %s71 = sphi 0, %s75
      %p72 = scmp.ge.s32.totalorder %s71, 1
      %s76 = sphi %s63, %s63
      %s77 = sphi [#allocation3], [#allocation3]
    $region46: #{tpu_custom_call.1} parent=42 // loop_header_branch
      %74 = sbr.rel (%p72) target = $region50
    $region47: #{tpu_custom_call.1} parent=42 // loop_body
      %v78 = vld [vmem:[%s76] sm:%s69]
      %79 = vst [vmem:[%s77] sm:%s69] %v78
    $region48: #{tpu_custom_call.1} parent=42 // loop_footer
      %s75 = sadd.s32 1, %s71
    $region49: #{tpu_custom_call.1} parent=42 // loop_footer_branch
      %70 = sbr.rel target = $region45
    $region50: #{tpu_custom_call.1} parent=42 // loop_exit
      _
  $region43: #{tpu_custom_call.1} parent=0 // pred_fallthru
    _
  // Predicated region
  $region62: #{tpu_custom_call.1} parent=0 // pred_check
    _
  $region63: #{tpu_custom_call.1} parent=0 // pred_check_branch
    %96 = sbr.rel (0) target = $region65
  $region64: #{tpu_custom_call.1} parent=0 // pred_region
    %97 = vsyncadd [#allocation5], 16
  $region65: #{tpu_custom_call.1} parent=0 // pred_fallthru
    _
  %s98 = sadd.s32 %s25, 1
  %s99 = sld [smem:[#allocation7 + %s98]]
  %s100 = sld [smem:[#allocation8 + %s98]]
  %s101 = scalar_lea.vmem %s3, %s99
  %s102 = scalar_lea.vmem [#allocation2], 1
  %s103 = scalar_lea.sflag [#allocation4], 1
  // Predicated region
  $region66: #{tpu_custom_call.1} parent=0 // pred_check
    _
  $region67: #{tpu_custom_call.1} parent=0 // pred_check_branch
    %105 = sbr.rel target = $region69
  $region68: #{tpu_custom_call.1} parent=0 // pred_region
    // Predicated region
    $region81: #{tpu_custom_call.1} parent=68 // pred_check
      _
    $region82: #{tpu_custom_call.1} parent=68 // pred_check_branch
      %121 = sbr.rel (0) target = $region84
    $region83: #{tpu_custom_call.1} parent=68 // pred_region
      %s123 = ssub.s32 2, 1
      loop: start=0, step=1, limit=1
      $region85: #{tpu_custom_call.1} parent=83 // loop_pre_header
        _
      $region86: #{tpu_custom_call.1} parent=83 // loop_header
        %s125 = sphi 0, %s129
        %p126 = scmp.ge.s32.totalorder %s125, 1
        %s130 = sphi %s101, %s101
        %s131 = sphi %s102, %s102
      $region87: #{tpu_custom_call.1} parent=83 // loop_header_branch
        %128 = sbr.rel (%p126) target = $region91
      $region88: #{tpu_custom_call.1} parent=83 // loop_body
        %v132 = vld [vmem:[%s130] sm:%s123]
        %133 = vst [vmem:[%s131] sm:%s123] %v132
      $region89: #{tpu_custom_call.1} parent=83 // loop_footer
        %s129 = sadd.s32 1, %s125
      $region90: #{tpu_custom_call.1} parent=83 // loop_footer_branch
        %124 = sbr.rel target = $region86
      $region91: #{tpu_custom_call.1} parent=83 // loop_exit
        _
    $region84: #{tpu_custom_call.1} parent=68 // pred_fallthru
      _
  $region69: #{tpu_custom_call.1} parent=0 // pred_fallthru
    _
  // Predicated region
  $region70: #{tpu_custom_call.1} parent=0 // pred_check
    _
  $region71: #{tpu_custom_call.1} parent=0 // pred_check_branch
    %107 = sbr.rel (0) target = $region73
  $region72: #{tpu_custom_call.1} parent=0 // pred_region
    %s109 = ssub.s32 2, 1
    loop: start=0, step=1, limit=1
    $region74: #{tpu_custom_call.1} parent=72 // loop_pre_header
      _
    $region75: #{tpu_custom_call.1} parent=72 // loop_header
      %s111 = sphi 0, %s115
      %p112 = scmp.ge.s32.totalorder %s111, 1
      %s116 = sphi %s101, %s101
      %s117 = sphi %s102, %s102
    $region76: #{tpu_custom_call.1} parent=72 // loop_header_branch
      %114 = sbr.rel (%p112) target = $region80
    $region77: #{tpu_custom_call.1} parent=72 // loop_body
      %v118 = vld [vmem:[%s116] sm:%s109]
      %119 = vst [vmem:[%s117] sm:%s109] %v118
    $region78: #{tpu_custom_call.1} parent=72 // loop_footer
      %s115 = sadd.s32 1, %s111
    $region79: #{tpu_custom_call.1} parent=72 // loop_footer_branch
      %110 = sbr.rel target = $region75
    $region80: #{tpu_custom_call.1} parent=72 // loop_exit
      _
  $region73: #{tpu_custom_call.1} parent=0 // pred_fallthru
    _
  // Predicated region
  $region92: #{tpu_custom_call.1} parent=0 // pred_check
    _
  $region93: #{tpu_custom_call.1} parent=0 // pred_check_branch
    %136 = sbr.rel (0) target = $region95
  $region94: #{tpu_custom_call.1} parent=0 // pred_region
    %137 = vsyncadd %s103, 16
  $region95: #{tpu_custom_call.1} parent=0 // pred_fallthru
    _
  %s138 = scalar_lea.vmem %s4, %s100
  %s139 = scalar_lea.vmem [#allocation3], 1
  %s140 = scalar_lea.sflag [#allocation5], 1
  // Predicated region
  $region96: #{tpu_custom_call.1} parent=0 // pred_check
    _
  $region97: #{tpu_custom_call.1} parent=0 // pred_check_branch
    %142 = sbr.rel target = $region99
  $region98: #{tpu_custom_call.1} parent=0 // pred_region
    // Predicated region
    $region111: #{tpu_custom_call.1} parent=98 // pred_check
      _
    $region112: #{tpu_custom_call.1} parent=98 // pred_check_branch
      %158 = sbr.rel (0) target = $region114
    $region113: #{tpu_custom_call.1} parent=98 // pred_region
      %s160 = ssub.s32 2, 1
      loop: start=0, step=1, limit=1
      $region115: #{tpu_custom_call.1} parent=113 // loop_pre_header
        _
      $region116: #{tpu_custom_call.1} parent=113 // loop_header
        %s162 = sphi 0, %s166
        %p163 = scmp.ge.s32.totalorder %s162, 1
        %s167 = sphi %s138, %s138
        %s168 = sphi %s139, %s139
      $region117: #{tpu_custom_call.1} parent=113 // loop_header_branch
        %165 = sbr.rel (%p163) target = $region121
      $region118: #{tpu_custom_call.1} parent=113 // loop_body
        %v169 = vld [vmem:[%s167] sm:%s160]
        %170 = vst [vmem:[%s168] sm:%s160] %v169
      $region119: #{tpu_custom_call.1} parent=113 // loop_footer
        %s166 = sadd.s32 1, %s162
      $region120: #{tpu_custom_call.1} parent=113 // loop_footer_branch
        %161 = sbr.rel target = $region116
      $region121: #{tpu_custom_call.1} parent=113 // loop_exit
        _
    $region114: #{tpu_custom_call.1} parent=98 // pred_fallthru
      _
  $region99: #{tpu_custom_call.1} parent=0 // pred_fallthru
    _
  // Predicated region
  $region100: #{tpu_custom_call.1} parent=0 // pred_check
    _
  $region101: #{tpu_custom_call.1} parent=0 // pred_check_branch
    %144 = sbr.rel (0) target = $region103
  $region102: #{tpu_custom_call.1} parent=0 // pred_region
    %s146 = ssub.s32 2, 1
    loop: start=0, step=1, limit=1
    $region104: #{tpu_custom_call.1} parent=102 // loop_pre_header
      _
    $region105: #{tpu_custom_call.1} parent=102 // loop_header
      %s148 = sphi 0, %s152
      %p149 = scmp.ge.s32.totalorder %s148, 1
      %s153 = sphi %s138, %s138
      %s154 = sphi %s139, %s139
    $region106: #{tpu_custom_call.1} parent=102 // loop_header_branch
      %151 = sbr.rel (%p149) target = $region110
    $region107: #{tpu_custom_call.1} parent=102 // loop_body
      %v155 = vld [vmem:[%s153] sm:%s146]
      %156 = vst [vmem:[%s154] sm:%s146] %v155
    $region108: #{tpu_custom_call.1} parent=102 // loop_footer
      %s152 = sadd.s32 1, %s148
    $region109: #{tpu_custom_call.1} parent=102 // loop_footer_branch
      %147 = sbr.rel target = $region105
    $region110: #{tpu_custom_call.1} parent=102 // loop_exit
      _
  $region103: #{tpu_custom_call.1} parent=0 // pred_fallthru
    _
  // Predicated region
  $region122: #{tpu_custom_call.1} parent=0 // pred_check
    _
  $region123: #{tpu_custom_call.1} parent=0 // pred_check_branch
    %173 = sbr.rel (0) target = $region125
  $region124: #{tpu_custom_call.1} parent=0 // pred_region
    %174 = vsyncadd %s140, 16
  $region125: #{tpu_custom_call.1} parent=0 // pred_fallthru
    _
  %s175 = sadd.s32 %s25, 2
  %s176 = sld [smem:[#allocation7 + %s175]]
  %s177 = sld [smem:[#allocation8 + %s175]]
  %s178 = scalar_lea.vmem %s3, %s176
  %s179 = scalar_lea.vmem [#allocation2], 2
  %s180 = scalar_lea.sflag [#allocation4], 2
  // Predicated region
  $region126: #{tpu_custom_call.1} parent=0 // pred_check
    _
  $region127: #{tpu_custom_call.1} parent=0 // pred_check_branch
    %182 = sbr.rel target = $region129
  $region128: #{tpu_custom_call.1} parent=0 // pred_region
    // Predicated region
    $region141: #{tpu_custom_call.1} parent=128 // pred_check
      _
    $region142: #{tpu_custom_call.1} parent=128 // pred_check_branch
      %198 = sbr.rel (0) target = $region144
    $region143: #{tpu_custom_call.1} parent=128 // pred_region
      %s200 = ssub.s32 2, 1
      loop: start=0, step=1, limit=1
      $region145: #{tpu_custom_call.1} parent=143 // loop_pre_header
        _
      $region146: #{tpu_custom_call.1} parent=143 // loop_header
        %s202 = sphi 0, %s206
        %p203 = scmp.ge.s32.totalorder %s202, 1
        %s207 = sphi %s178, %s178
        %s208 = sphi %s179, %s179
      $region147: #{tpu_custom_call.1} parent=143 // loop_header_branch
        %205 = sbr.rel (%p203) target = $region151
      $region148: #{tpu_custom_call.1} parent=143 // loop_body
        %v209 = vld [vmem:[%s207] sm:%s200]
        %210 = vst [vmem:[%s208] sm:%s200] %v209
      $region149: #{tpu_custom_call.1} parent=143 // loop_footer
        %s206 = sadd.s32 1, %s202
      $region150: #{tpu_custom_call.1} parent=143 // loop_footer_branch
        %201 = sbr.rel target = $region146
      $region151: #{tpu_custom_call.1} parent=143 // loop_exit
        _
    $region144: #{tpu_custom_call.1} parent=128 // pred_fallthru
      _
  $region129: #{tpu_custom_call.1} parent=0 // pred_fallthru
    _
  // Predicated region
  $region130: #{tpu_custom_call.1} parent=0 // pred_check
    _
  $region131: #{tpu_custom_call.1} parent=0 // pred_check_branch
    %184 = sbr.rel (0) target = $region133
  $region132: #{tpu_custom_call.1} parent=0 // pred_region
    %s186 = ssub.s32 2, 1
    loop: start=0, step=1, limit=1
    $region134: #{tpu_custom_call.1} parent=132 // loop_pre_header
      _
    $region135: #{tpu_custom_call.1} parent=132 // loop_header
      %s188 = sphi 0, %s192
      %p189 = scmp.ge.s32.totalorder %s188, 1
      %s193 = sphi %s178, %s178
      %s194 = sphi %s179, %s179
    $region136: #{tpu_custom_call.1} parent=132 // loop_header_branch
      %191 = sbr.rel (%p189) target = $region140
    $region137: #{tpu_custom_call.1} parent=132 // loop_body
      %v195 = vld [vmem:[%s193] sm:%s186]
      %196 = vst [vmem:[%s194] sm:%s186] %v195
    $region138: #{tpu_custom_call.1} parent=132 // loop_footer
      %s192 = sadd.s32 1, %s188
    $region139: #{tpu_custom_call.1} parent=132 // loop_footer_branch
      %187 = sbr.rel target = $region135
    $region140: #{tpu_custom_call.1} parent=132 // loop_exit
      _
  $region133: #{tpu_custom_call.1} parent=0 // pred_fallthru
    _
  // Predicated region
  $region152: #{tpu_custom_call.1} parent=0 // pred_check
    _
  $region153: #{tpu_custom_call.1} parent=0 // pred_check_branch
    %213 = sbr.rel (0) target = $region155
  $region154: #{tpu_custom_call.1} parent=0 // pred_region
    %214 = vsyncadd %s180, 16
  $region155: #{tpu_custom_call.1} parent=0 // pred_fallthru
    _
  %s215 = scalar_lea.vmem %s4, %s177
  %s216 = scalar_lea.vmem [#allocation3], 2
  %s217 = scalar_lea.sflag [#allocation5], 2
  // Predicated region
  $region156: #{tpu_custom_call.1} parent=0 // pred_check
    _
  $region157: #{tpu_custom_call.1} parent=0 // pred_check_branch
    %219 = sbr.rel target = $region159
  $region158: #{tpu_custom_call.1} parent=0 // pred_region
    // Predicated region
    $region171: #{tpu_custom_call.1} parent=158 // pred_check
      _
    $region172: #{tpu_custom_call.1} parent=158 // pred_check_branch
      %235 = sbr.rel (0) target = $region174
    $region173: #{tpu_custom_call.1} parent=158 // pred_region
      %s237 = ssub.s32 2, 1
      loop: start=0, step=1, limit=1
      $region175: #{tpu_custom_call.1} parent=173 // loop_pre_header
        _
      $region176: #{tpu_custom_call.1} parent=173 // loop_header
        %s239 = sphi 0, %s243
        %p240 = scmp.ge.s32.totalorder %s239, 1
        %s244 = sphi %s215, %s215
        %s245 = sphi %s216, %s216
      $region177: #{tpu_custom_call.1} parent=173 // loop_header_branch
        %242 = sbr.rel (%p240) target = $region181
      $region178: #{tpu_custom_call.1} parent=173 // loop_body
        %v246 = vld [vmem:[%s244] sm:%s237]
        %247 = vst [vmem:[%s245] sm:%s237] %v246
      $region179: #{tpu_custom_call.1} parent=173 // loop_footer
        %s243 = sadd.s32 1, %s239
      $region180: #{tpu_custom_call.1} parent=173 // loop_footer_branch
        %238 = sbr.rel target = $region176
      $region181: #{tpu_custom_call.1} parent=173 // loop_exit
        _
    $region174: #{tpu_custom_call.1} parent=158 // pred_fallthru
      _
  $region159: #{tpu_custom_call.1} parent=0 // pred_fallthru
    _
  // Predicated region
  $region160: #{tpu_custom_call.1} parent=0 // pred_check
    _
  $region161: #{tpu_custom_call.1} parent=0 // pred_check_branch
    %221 = sbr.rel (0) target = $region163
  $region162: #{tpu_custom_call.1} parent=0 // pred_region
    %s223 = ssub.s32 2, 1
    loop: start=0, step=1, limit=1
    $region164: #{tpu_custom_call.1} parent=162 // loop_pre_header
      _
    $region165: #{tpu_custom_call.1} parent=162 // loop_header
      %s225 = sphi 0, %s229
      %p226 = scmp.ge.s32.totalorder %s225, 1
      %s230 = sphi %s215, %s215
      %s231 = sphi %s216, %s216
    $region166: #{tpu_custom_call.1} parent=162 // loop_header_branch
      %228 = sbr.rel (%p226) target = $region170
    $region167: #{tpu_custom_call.1} parent=162 // loop_body
      %v232 = vld [vmem:[%s230] sm:%s223]
      %233 = vst [vmem:[%s231] sm:%s223] %v232
    $region168: #{tpu_custom_call.1} parent=162 // loop_footer
      %s229 = sadd.s32 1, %s225
    $region169: #{tpu_custom_call.1} parent=162 // loop_footer_branch
      %224 = sbr.rel target = $region165
    $region170: #{tpu_custom_call.1} parent=162 // loop_exit
      _
  $region163: #{tpu_custom_call.1} parent=0 // pred_fallthru
    _
  // Predicated region
  $region182: #{tpu_custom_call.1} parent=0 // pred_check
    _
  $region183: #{tpu_custom_call.1} parent=0 // pred_check_branch
    %250 = sbr.rel (0) target = $region185
  $region184: #{tpu_custom_call.1} parent=0 // pred_region
    %251 = vsyncadd %s217, 16
  $region185: #{tpu_custom_call.1} parent=0 // pred_fallthru
    _
  %s252 = sadd.s32 %s25, 3
  %s253 = sld [smem:[#allocation7 + %s252]]
  %s254 = sld [smem:[#allocation8 + %s252]]
  %s255 = scalar_lea.vmem %s3, %s253
  %s256 = scalar_lea.vmem [#allocation2], 3
  %s257 = scalar_lea.sflag [#allocation4], 3
  // Predicated region
  $region186: #{tpu_custom_call.1} parent=0 // pred_check
    _
  $region187: #{tpu_custom_call.1} parent=0 // pred_check_branch
    %259 = sbr.rel target = $region189
  $region188: #{tpu_custom_call.1} parent=0 // pred_region
    // Predicated region
    $region201: #{tpu_custom_call.1} parent=188 // pred_check
      _
    $region202: #{tpu_custom_call.1} parent=188 // pred_check_branch
      %275 = sbr.rel (0) target = $region204
    $region203: #{tpu_custom_call.1} parent=188 // pred_region
      %s277 = ssub.s32 2, 1
      loop: start=0, step=1, limit=1
      $region205: #{tpu_custom_call.1} parent=203 // loop_pre_header
        _
      $region206: #{tpu_custom_call.1} parent=203 // loop_header
        %s279 = sphi 0, %s283
        %p280 = scmp.ge.s32.totalorder %s279, 1
        %s284 = sphi %s255, %s255
        %s285 = sphi %s256, %s256
      $region207: #{tpu_custom_call.1} parent=203 // loop_header_branch
        %282 = sbr.rel (%p280) target = $region211
      $region208: #{tpu_custom_call.1} parent=203 // loop_body
        %v286 = vld [vmem:[%s284] sm:%s277]
        %287 = vst [vmem:[%s285] sm:%s277] %v286
      $region209: #{tpu_custom_call.1} parent=203 // loop_footer
        %s283 = sadd.s32 1, %s279
      $region210: #{tpu_custom_call.1} parent=203 // loop_footer_branch
        %278 = sbr.rel target = $region206
      $region211: #{tpu_custom_call.1} parent=203 // loop_exit
        _
    $region204: #{tpu_custom_call.1} parent=188 // pred_fallthru
      _
  $region189: #{tpu_custom_call.1} parent=0 // pred_fallthru
    _
  // Predicated region
  $region190: #{tpu_custom_call.1} parent=0 // pred_check
    _
  $region191: #{tpu_custom_call.1} parent=0 // pred_check_branch
    %261 = sbr.rel (0) target = $region193
  $region192: #{tpu_custom_call.1} parent=0 // pred_region
    %s263 = ssub.s32 2, 1
    loop: start=0, step=1, limit=1
    $region194: #{tpu_custom_call.1} parent=192 // loop_pre_header
      _
    $region195: #{tpu_custom_call.1} parent=192 // loop_header
      %s265 = sphi 0, %s269
      %p266 = scmp.ge.s32.totalorder %s265, 1
      %s270 = sphi %s255, %s255
      %s271 = sphi %s256, %s256
    $region196: #{tpu_custom_call.1} parent=192 // loop_header_branch
      %268 = sbr.rel (%p266) target = $region200
    $region197: #{tpu_custom_call.1} parent=192 // loop_body
      %v272 = vld [vmem:[%s270] sm:%s263]
      %273 = vst [vmem:[%s271] sm:%s263] %v272
    $region198: #{tpu_custom_call.1} parent=192 // loop_footer
      %s269 = sadd.s32 1, %s265
    $region199: #{tpu_custom_call.1} parent=192 // loop_footer_branch
      %264 = sbr.rel target = $region195
    $region200: #{tpu_custom_call.1} parent=192 // loop_exit
      _
  $region193: #{tpu_custom_call.1} parent=0 // pred_fallthru
    _
  // Predicated region
  $region212: #{tpu_custom_call.1} parent=0 // pred_check
    _
  $region213: #{tpu_custom_call.1} parent=0 // pred_check_branch
    %290 = sbr.rel (0) target = $region215
  $region214: #{tpu_custom_call.1} parent=0 // pred_region
    %291 = vsyncadd %s257, 16
  $region215: #{tpu_custom_call.1} parent=0 // pred_fallthru
    _
  %s292 = scalar_lea.vmem %s4, %s254
  %s293 = scalar_lea.vmem [#allocation3], 3
  %s294 = scalar_lea.sflag [#allocation5], 3
  // Predicated region
  $region216: #{tpu_custom_call.1} parent=0 // pred_check
    _
  $region217: #{tpu_custom_call.1} parent=0 // pred_check_branch
    %296 = sbr.rel target = $region219
  $region218: #{tpu_custom_call.1} parent=0 // pred_region
    // Predicated region
    $region231: #{tpu_custom_call.1} parent=218 // pred_check
      _
    $region232: #{tpu_custom_call.1} parent=218 // pred_check_branch
      %312 = sbr.rel (0) target = $region234
    $region233: #{tpu_custom_call.1} parent=218 // pred_region
      %s314 = ssub.s32 2, 1
      loop: start=0, step=1, limit=1
      $region235: #{tpu_custom_call.1} parent=233 // loop_pre_header
        _
      $region236: #{tpu_custom_call.1} parent=233 // loop_header
        %s316 = sphi 0, %s320
        %p317 = scmp.ge.s32.totalorder %s316, 1
        %s321 = sphi %s292, %s292
        %s322 = sphi %s293, %s293
      $region237: #{tpu_custom_call.1} parent=233 // loop_header_branch
        %319 = sbr.rel (%p317) target = $region241
      $region238: #{tpu_custom_call.1} parent=233 // loop_body
        %v323 = vld [vmem:[%s321] sm:%s314]
        %324 = vst [vmem:[%s322] sm:%s314] %v323
      $region239: #{tpu_custom_call.1} parent=233 // loop_footer
        %s320 = sadd.s32 1, %s316
      $region240: #{tpu_custom_call.1} parent=233 // loop_footer_branch
        %315 = sbr.rel target = $region236
      $region241: #{tpu_custom_call.1} parent=233 // loop_exit
        _
    $region234: #{tpu_custom_call.1} parent=218 // pred_fallthru
      _
  $region219: #{tpu_custom_call.1} parent=0 // pred_fallthru
    _
  // Predicated region
  $region220: #{tpu_custom_call.1} parent=0 // pred_check
    _
  $region221: #{tpu_custom_call.1} parent=0 // pred_check_branch
    %298 = sbr.rel (0) target = $region223
  $region222: #{tpu_custom_call.1} parent=0 // pred_region
    %s300 = ssub.s32 2, 1
    loop: start=0, step=1, limit=1
    $region224: #{tpu_custom_call.1} parent=222 // loop_pre_header
      _
    $region225: #{tpu_custom_call.1} parent=222 // loop_header
      %s302 = sphi 0, %s306
      %p303 = scmp.ge.s32.totalorder %s302, 1
      %s307 = sphi %s292, %s292
      %s308 = sphi %s293, %s293
    $region226: #{tpu_custom_call.1} parent=222 // loop_header_branch
      %305 = sbr.rel (%p303) target = $region230
    $region227: #{tpu_custom_call.1} parent=222 // loop_body
      %v309 = vld [vmem:[%s307] sm:%s300]
      %310 = vst [vmem:[%s308] sm:%s300] %v309
    $region228: #{tpu_custom_call.1} parent=222 // loop_footer
      %s306 = sadd.s32 1, %s302
    $region229: #{tpu_custom_call.1} parent=222 // loop_footer_branch
      %301 = sbr.rel target = $region225
    $region230: #{tpu_custom_call.1} parent=222 // loop_exit
      _
  $region223: #{tpu_custom_call.1} parent=0 // pred_fallthru
    _
  // Predicated region
  $region242: #{tpu_custom_call.1} parent=0 // pred_check
    _
  $region243: #{tpu_custom_call.1} parent=0 // pred_check_branch
    %327 = sbr.rel (0) target = $region245
  $region244: #{tpu_custom_call.1} parent=0 // pred_region
    %328 = vsyncadd %s294, 16
  $region245: #{tpu_custom_call.1} parent=0 // pred_fallthru
    _
  %s329 = sadd.s32 %s25, 4
  %s330 = sld [smem:[#allocation7 + %s329]]
  %s331 = sld [smem:[#allocation8 + %s329]]
  %s332 = scalar_lea.vmem %s3, %s330
  %s333 = scalar_lea.vmem [#allocation2], 4
  %s334 = scalar_lea.sflag [#allocation4], 4
  // Predicated region
  $region246: #{tpu_custom_call.1} parent=0 // pred_check
    _
  $region247: #{tpu_custom_call.1} parent=0 // pred_check_branch
    %336 = sbr.rel target = $region249
  $region248: #{tpu_custom_call.1} parent=0 // pred_region
    // Predicated region
    $region261: #{tpu_custom_call.1} parent=248 // pred_check
      _
    $region262: #{tpu_custom_call.1} parent=248 // pred_check_branch
      %352 = sbr.rel (0) target = $region264
    $region263: #{tpu_custom_call.1} parent=248 // pred_region
      %s354 = ssub.s32 2, 1
      loop: start=0, step=1, limit=1
      $region265: #{tpu_custom_call.1} parent=263 // loop_pre_header
        _
      $region266: #{tpu_custom_call.1} parent=263 // loop_header
        %s356 = sphi 0, %s360
        %p357 = scmp.ge.s32.totalorder %s356, 1
        %s361 = sphi %s332, %s332
        %s362 = sphi %s333, %s333
      $region267: #{tpu_custom_call.1} parent=263 // loop_header_branch
        %359 = sbr.rel (%p357) target = $region271
      $region268: #{tpu_custom_call.1} parent=263 // loop_body
        %v363 = vld [vmem:[%s361] sm:%s354]
        %364 = vst [vmem:[%s362] sm:%s354] %v363
      $region269: #{tpu_custom_call.1} parent=263 // loop_footer
        %s360 = sadd.s32 1, %s356
      $region270: #{tpu_custom_call.1} parent=263 // loop_footer_branch
        %355 = sbr.rel target = $region266
      $region271: #{tpu_custom_call.1} parent=263 // loop_exit
        _
    $region264: #{tpu_custom_call.1} parent=248 // pred_fallthru
      _
  $region249: #{tpu_custom_call.1} parent=0 // pred_fallthru
    _
  // Predicated region
  $region250: #{tpu_custom_call.1} parent=0 // pred_check
    _
  $region251: #{tpu_custom_call.1} parent=0 // pred_check_branch
    %338 = sbr.rel (0) target = $region253
  $region252: #{tpu_custom_call.1} parent=0 // pred_region
    %s340 = ssub.s32 2, 1
    loop: start=0, step=1, limit=1
    $region254: #{tpu_custom_call.1} parent=252 // loop_pre_header
      _
    $region255: #{tpu_custom_call.1} parent=252 // loop_header
      %s342 = sphi 0, %s346
      %p343 = scmp.ge.s32.totalorder %s342, 1
      %s347 = sphi %s332, %s332
      %s348 = sphi %s333, %s333
    $region256: #{tpu_custom_call.1} parent=252 // loop_header_branch
      %345 = sbr.rel (%p343) target = $region260
    $region257: #{tpu_custom_call.1} parent=252 // loop_body
      %v349 = vld [vmem:[%s347] sm:%s340]
      %350 = vst [vmem:[%s348] sm:%s340] %v349
    $region258: #{tpu_custom_call.1} parent=252 // loop_footer
      %s346 = sadd.s32 1, %s342
    $region259: #{tpu_custom_call.1} parent=252 // loop_footer_branch
      %341 = sbr.rel target = $region255
    $region260: #{tpu_custom_call.1} parent=252 // loop_exit
      _
  $region253: #{tpu_custom_call.1} parent=0 // pred_fallthru
    _
  // Predicated region
  $region272: #{tpu_custom_call.1} parent=0 // pred_check
    _
  $region273: #{tpu_custom_call.1} parent=0 // pred_check_branch
    %367 = sbr.rel (0) target = $region275
  $region274: #{tpu_custom_call.1} parent=0 // pred_region
    %368 = vsyncadd %s334, 16
  $region275: #{tpu_custom_call.1} parent=0 // pred_fallthru
    _
  %s369 = scalar_lea.vmem %s4, %s331
  %s370 = scalar_lea.vmem [#allocation3], 4
  %s371 = scalar_lea.sflag [#allocation5], 4
  // Predicated region
  $region276: #{tpu_custom_call.1} parent=0 // pred_check
    _
  $region277: #{tpu_custom_call.1} parent=0 // pred_check_branch
    %373 = sbr.rel target = $region279
  $region278: #{tpu_custom_call.1} parent=0 // pred_region
    // Predicated region
    $region291: #{tpu_custom_call.1} parent=278 // pred_check
      _
    $region292: #{tpu_custom_call.1} parent=278 // pred_check_branch
      %389 = sbr.rel (0) target = $region294
    $region293: #{tpu_custom_call.1} parent=278 // pred_region
      %s391 = ssub.s32 2, 1
      loop: start=0, step=1, limit=1
      $region295: #{tpu_custom_call.1} parent=293 // loop_pre_header
        _
      $region296: #{tpu_custom_call.1} parent=293 // loop_header
        %s393 = sphi 0, %s397
        %p394 = scmp.ge.s32.totalorder %s393, 1
        %s398 = sphi %s369, %s369
        %s399 = sphi %s370, %s370
      $region297: #{tpu_custom_call.1} parent=293 // loop_header_branch
        %396 = sbr.rel (%p394) target = $region301
      $region298: #{tpu_custom_call.1} parent=293 // loop_body
        %v400 = vld [vmem:[%s398] sm:%s391]
        %401 = vst [vmem:[%s399] sm:%s391] %v400
      $region299: #{tpu_custom_call.1} parent=293 // loop_footer
        %s397 = sadd.s32 1, %s393
      $region300: #{tpu_custom_call.1} parent=293 // loop_footer_branch
        %392 = sbr.rel target = $region296
      $region301: #{tpu_custom_call.1} parent=293 // loop_exit
        _
    $region294: #{tpu_custom_call.1} parent=278 // pred_fallthru
      _
  $region279: #{tpu_custom_call.1} parent=0 // pred_fallthru
    _
  // Predicated region
  $region280: #{tpu_custom_call.1} parent=0 // pred_check
    _
  $region281: #{tpu_custom_call.1} parent=0 // pred_check_branch
    %375 = sbr.rel (0) target = $region283
  $region282: #{tpu_custom_call.1} parent=0 // pred_region
    %s377 = ssub.s32 2, 1
    loop: start=0, step=1, limit=1
    $region284: #{tpu_custom_call.1} parent=282 // loop_pre_header
      _
    $region285: #{tpu_custom_call.1} parent=282 // loop_header
      %s379 = sphi 0, %s383
      %p380 = scmp.ge.s32.totalorder %s379, 1
      %s384 = sphi %s369, %s369
      %s385 = sphi %s370, %s370
    $region286: #{tpu_custom_call.1} parent=282 // loop_header_branch
      %382 = sbr.rel (%p380) target = $region290
    $region287: #{tpu_custom_call.1} parent=282 // loop_body
      %v386 = vld [vmem:[%s384] sm:%s377]
      %387 = vst [vmem:[%s385] sm:%s377] %v386
    $region288: #{tpu_custom_call.1} parent=282 // loop_footer
      %s383 = sadd.s32 1, %s379
    $region289: #{tpu_custom_call.1} parent=282 // loop_footer_branch
      %378 = sbr.rel target = $region285
    $region290: #{tpu_custom_call.1} parent=282 // loop_exit
      _
  $region283: #{tpu_custom_call.1} parent=0 // pred_fallthru
    _
  // Predicated region
  $region302: #{tpu_custom_call.1} parent=0 // pred_check
    _
  $region303: #{tpu_custom_call.1} parent=0 // pred_check_branch
    %404 = sbr.rel (0) target = $region305
  $region304: #{tpu_custom_call.1} parent=0 // pred_region
    %405 = vsyncadd %s371, 16
  $region305: #{tpu_custom_call.1} parent=0 // pred_fallthru
    _
  %s406 = sadd.s32 %s25, 5
  %s407 = sld [smem:[#allocation7 + %s406]]
  %s408 = sld [smem:[#allocation8 + %s406]]
  %s409 = scalar_lea.vmem %s3, %s407
  %s410 = scalar_lea.vmem [#allocation2], 5
  %s411 = scalar_lea.sflag [#allocation4], 5
  // Predicated region
  $region306: #{tpu_custom_call.1} parent=0 // pred_check
    _
  $region307: #{tpu_custom_call.1} parent=0 // pred_check_branch
    %413 = sbr.rel target = $region309
  $region308: #{tpu_custom_call.1} parent=0 // pred_region
    // Predicated region
    $region321: #{tpu_custom_call.1} parent=308 // pred_check
      _
    $region322: #{tpu_custom_call.1} parent=308 // pred_check_branch
      %429 = sbr.rel (0) target = $region324
    $region323: #{tpu_custom_call.1} parent=308 // pred_region
      %s431 = ssub.s32 2, 1
      loop: start=0, step=1, limit=1
      $region325: #{tpu_custom_call.1} parent=323 // loop_pre_header
        _
      $region326: #{tpu_custom_call.1} parent=323 // loop_header
        %s433 = sphi 0, %s437
        %p434 = scmp.ge.s32.totalorder %s433, 1
        %s438 = sphi %s409, %s409
        %s439 = sphi %s410, %s410
      $region327: #{tpu_custom_call.1} parent=323 // loop_header_branch
        %436 = sbr.rel (%p434) target = $region331
      $region328: #{tpu_custom_call.1} parent=323 // loop_body
        %v440 = vld [vmem:[%s438] sm:%s431]
        %441 = vst [vmem:[%s439] sm:%s431] %v440
      $region329: #{tpu_custom_call.1} parent=323 // loop_footer
        %s437 = sadd.s32 1, %s433
      $region330: #{tpu_custom_call.1} parent=323 // loop_footer_branch
        %432 = sbr.rel target = $region326
      $region331: #{tpu_custom_call.1} parent=323 // loop_exit
        _
    $region324: #{tpu_custom_call.1} parent=308 // pred_fallthru
      _
  $region309: #{tpu_custom_call.1} parent=0 // pred_fallthru
    _
  // Predicated region
  $region310: #{tpu_custom_call.1} parent=0 // pred_check
    _
  $region311: #{tpu_custom_call.1} parent=0 // pred_check_branch
    %415 = sbr.rel (0) target = $region313
  $region312: #{tpu_custom_call.1} parent=0 // pred_region
    %s417 = ssub.s32 2, 1
    loop: start=0, step=1, limit=1
    $region314: #{tpu_custom_call.1} parent=312 // loop_pre_header
      _
    $region315: #{tpu_custom_call.1} parent=312 // loop_header
      %s419 = sphi 0, %s423
      %p420 = scmp.ge.s32.totalorder %s419, 1
      %s424 = sphi %s409, %s409
      %s425 = sphi %s410, %s410
    $region316: #{tpu_custom_call.1} parent=312 // loop_header_branch
      %422 = sbr.rel (%p420) target = $region320
    $region317: #{tpu_custom_call.1} parent=312 // loop_body
      %v426 = vld [vmem:[%s424] sm:%s417]
      %427 = vst [vmem:[%s425] sm:%s417] %v426
    $region318: #{tpu_custom_call.1} parent=312 // loop_footer
      %s423 = sadd.s32 1, %s419
    $region319: #{tpu_custom_call.1} parent=312 // loop_footer_branch
      %418 = sbr.rel target = $region315
    $region320: #{tpu_custom_call.1} parent=312 // loop_exit
      _
  $region313: #{tpu_custom_call.1} parent=0 // pred_fallthru
    _
  // Predicated region
  $region332: #{tpu_custom_call.1} parent=0 // pred_check
    _
  $region333: #{tpu_custom_call.1} parent=0 // pred_check_branch
    %444 = sbr.rel (0) target = $region335
  $region334: #{tpu_custom_call.1} parent=0 // pred_region
    %445 = vsyncadd %s411, 16
  $region335: #{tpu_custom_call.1} parent=0 // pred_fallthru
    _
  %s446 = scalar_lea.vmem %s4, %s408
  %s447 = scalar_lea.vmem [#allocation3], 5
  %s448 = scalar_lea.sflag [#allocation5], 5
  // Predicated region
  $region336: #{tpu_custom_call.1} parent=0 // pred_check
    _
  $region337: #{tpu_custom_call.1} parent=0 // pred_check_branch
    %450 = sbr.rel target = $region339
  $region338: #{tpu_custom_call.1} parent=0 // pred_region
    // Predicated region
    $region351: #{tpu_custom_call.1} parent=338 // pred_check
      _
    $region352: #{tpu_custom_call.1} parent=338 // pred_check_branch
      %466 = sbr.rel (0) target = $region354
    $region353: #{tpu_custom_call.1} parent=338 // pred_region
      %s468 = ssub.s32 2, 1
      loop: start=0, step=1, limit=1
      $region355: #{tpu_custom_call.1} parent=353 // loop_pre_header
        _
      $region356: #{tpu_custom_call.1} parent=353 // loop_header
        %s470 = sphi 0, %s474
        %p471 = scmp.ge.s32.totalorder %s470, 1
        %s475 = sphi %s446, %s446
        %s476 = sphi %s447, %s447
      $region357: #{tpu_custom_call.1} parent=353 // loop_header_branch
        %473 = sbr.rel (%p471) target = $region361
      $region358: #{tpu_custom_call.1} parent=353 // loop_body
        %v477 = vld [vmem:[%s475] sm:%s468]
        %478 = vst [vmem:[%s476] sm:%s468] %v477
      $region359: #{tpu_custom_call.1} parent=353 // loop_footer
        %s474 = sadd.s32 1, %s470
      $region360: #{tpu_custom_call.1} parent=353 // loop_footer_branch
        %469 = sbr.rel target = $region356
      $region361: #{tpu_custom_call.1} parent=353 // loop_exit
        _
    $region354: #{tpu_custom_call.1} parent=338 // pred_fallthru
      _
  $region339: #{tpu_custom_call.1} parent=0 // pred_fallthru
    _
  // Predicated region
  $region340: #{tpu_custom_call.1} parent=0 // pred_check
    _
  $region341: #{tpu_custom_call.1} parent=0 // pred_check_branch
    %452 = sbr.rel (0) target = $region343
  $region342: #{tpu_custom_call.1} parent=0 // pred_region
    %s454 = ssub.s32 2, 1
    loop: start=0, step=1, limit=1
    $region344: #{tpu_custom_call.1} parent=342 // loop_pre_header
      _
    $region345: #{tpu_custom_call.1} parent=342 // loop_header
      %s456 = sphi 0, %s460
      %p457 = scmp.ge.s32.totalorder %s456, 1
      %s461 = sphi %s446, %s446
      %s462 = sphi %s447, %s447
    $region346: #{tpu_custom_call.1} parent=342 // loop_header_branch
      %459 = sbr.rel (%p457) target = $region350
    $region347: #{tpu_custom_call.1} parent=342 // loop_body
      %v463 = vld [vmem:[%s461] sm:%s454]
      %464 = vst [vmem:[%s462] sm:%s454] %v463
    $region348: #{tpu_custom_call.1} parent=342 // loop_footer
      %s460 = sadd.s32 1, %s456
    $region349: #{tpu_custom_call.1} parent=342 // loop_footer_branch
      %455 = sbr.rel target = $region345
    $region350: #{tpu_custom_call.1} parent=342 // loop_exit
      _
  $region343: #{tpu_custom_call.1} parent=0 // pred_fallthru
    _
  // Predicated region
  $region362: #{tpu_custom_call.1} parent=0 // pred_check
    _
  $region363: #{tpu_custom_call.1} parent=0 // pred_check_branch
    %481 = sbr.rel (0) target = $region365
  $region364: #{tpu_custom_call.1} parent=0 // pred_region
    %482 = vsyncadd %s448, 16
  $region365: #{tpu_custom_call.1} parent=0 // pred_fallthru
    _
  %s483 = sadd.s32 %s25, 6
  %s484 = sld [smem:[#allocation7 + %s483]]
  %s485 = sld [smem:[#allocation8 + %s483]]
  %s486 = scalar_lea.vmem %s3, %s484
  %s487 = scalar_lea.vmem [#allocation2], 6
  %s488 = scalar_lea.sflag [#allocation4], 6
  // Predicated region
  $region366: #{tpu_custom_call.1} parent=0 // pred_check
    _
  $region367: #{tpu_custom_call.1} parent=0 // pred_check_branch
    %490 = sbr.rel target = $region369
  $region368: #{tpu_custom_call.1} parent=0 // pred_region
    // Predicated region
    $region381: #{tpu_custom_call.1} parent=368 // pred_check
      _
    $region382: #{tpu_custom_call.1} parent=368 // pred_check_branch
      %506 = sbr.rel (0) target = $region384
    $region383: #{tpu_custom_call.1} parent=368 // pred_region
      %s508 = ssub.s32 2, 1
      loop: start=0, step=1, limit=1
      $region385: #{tpu_custom_call.1} parent=383 // loop_pre_header
        _
      $region386: #{tpu_custom_call.1} parent=383 // loop_header
        %s510 = sphi 0, %s514
        %p511 = scmp.ge.s32.totalorder %s510, 1
        %s515 = sphi %s486, %s486
        %s516 = sphi %s487, %s487
      $region387: #{tpu_custom_call.1} parent=383 // loop_header_branch
        %513 = sbr.rel (%p511) target = $region391
      $region388: #{tpu_custom_call.1} parent=383 // loop_body
        %v517 = vld [vmem:[%s515] sm:%s508]
        %518 = vst [vmem:[%s516] sm:%s508] %v517
      $region389: #{tpu_custom_call.1} parent=383 // loop_footer
        %s514 = sadd.s32 1, %s510
      $region390: #{tpu_custom_call.1} parent=383 // loop_footer_branch
        %509 = sbr.rel target = $region386
      $region391: #{tpu_custom_call.1} parent=383 // loop_exit
        _
    $region384: #{tpu_custom_call.1} parent=368 // pred_fallthru
      _
  $region369: #{tpu_custom_call.1} parent=0 // pred_fallthru
    _
  // Predicated region
  $region370: #{tpu_custom_call.1} parent=0 // pred_check
    _
  $region371: #{tpu_custom_call.1} parent=0 // pred_check_branch
    %492 = sbr.rel (0) target = $region373
  $region372: #{tpu_custom_call.1} parent=0 // pred_region
    %s494 = ssub.s32 2, 1
    loop: start=0, step=1, limit=1
    $region374: #{tpu_custom_call.1} parent=372 // loop_pre_header
      _
    $region375: #{tpu_custom_call.1} parent=372 // loop_header
      %s496 = sphi 0, %s500
      %p497 = scmp.ge.s32.totalorder %s496, 1
      %s501 = sphi %s486, %s486
      %s502 = sphi %s487, %s487
    $region376: #{tpu_custom_call.1} parent=372 // loop_header_branch
      %499 = sbr.rel (%p497) target = $region380
    $region377: #{tpu_custom_call.1} parent=372 // loop_body
      %v503 = vld [vmem:[%s501] sm:%s494]
      %504 = vst [vmem:[%s502] sm:%s494] %v503
    $region378: #{tpu_custom_call.1} parent=372 // loop_footer
      %s500 = sadd.s32 1, %s496
    $region379: #{tpu_custom_call.1} parent=372 // loop_footer_branch
      %495 = sbr.rel target = $region375
    $region380: #{tpu_custom_call.1} parent=372 // loop_exit
      _
  $region373: #{tpu_custom_call.1} parent=0 // pred_fallthru
    _
  // Predicated region
  $region392: #{tpu_custom_call.1} parent=0 // pred_check
    _
  $region393: #{tpu_custom_call.1} parent=0 // pred_check_branch
    %521 = sbr.rel (0) target = $region395
  $region394: #{tpu_custom_call.1} parent=0 // pred_region
    %522 = vsyncadd %s488, 16
  $region395: #{tpu_custom_call.1} parent=0 // pred_fallthru
    _
  %s523 = scalar_lea.vmem %s4, %s485
  %s524 = scalar_lea.vmem [#allocation3], 6
  %s525 = scalar_lea.sflag [#allocation5], 6
  // Predicated region
  $region396: #{tpu_custom_call.1} parent=0 // pred_check
    _
  $region397: #{tpu_custom_call.1} parent=0 // pred_check_branch
    %527 = sbr.rel target = $region399
  $region398: #{tpu_custom_call.1} parent=0 // pred_region
    // Predicated region
    $region411: #{tpu_custom_call.1} parent=398 // pred_check
      _
    $region412: #{tpu_custom_call.1} parent=398 // pred_check_branch
      %543 = sbr.rel (0) target = $region414
    $region413: #{tpu_custom_call.1} parent=398 // pred_region
      %s545 = ssub.s32 2, 1
      loop: start=0, step=1, limit=1
      $region415: #{tpu_custom_call.1} parent=413 // loop_pre_header
        _
      $region416: #{tpu_custom_call.1} parent=413 // loop_header
        %s547 = sphi 0, %s551
        %p548 = scmp.ge.s32.totalorder %s547, 1
        %s552 = sphi %s523, %s523
        %s553 = sphi %s524, %s524
      $region417: #{tpu_custom_call.1} parent=413 // loop_header_branch
        %550 = sbr.rel (%p548) target = $region421
      $region418: #{tpu_custom_call.1} parent=413 // loop_body
        %v554 = vld [vmem:[%s552] sm:%s545]
        %555 = vst [vmem:[%s553] sm:%s545] %v554
      $region419: #{tpu_custom_call.1} parent=413 // loop_footer
        %s551 = sadd.s32 1, %s547
      $region420: #{tpu_custom_call.1} parent=413 // loop_footer_branch
        %546 = sbr.rel target = $region416
      $region421: #{tpu_custom_call.1} parent=413 // loop_exit
        _
    $region414: #{tpu_custom_call.1} parent=398 // pred_fallthru
      _
  $region399: #{tpu_custom_call.1} parent=0 // pred_fallthru
    _
  // Predicated region
  $region400: #{tpu_custom_call.1} parent=0 // pred_check
    _
  $region401: #{tpu_custom_call.1} parent=0 // pred_check_branch
    %529 = sbr.rel (0) target = $region403
  $region402: #{tpu_custom_call.1} parent=0 // pred_region
    %s531 = ssub.s32 2, 1
    loop: start=0, step=1, limit=1
    $region404: #{tpu_custom_call.1} parent=402 // loop_pre_header
      _
    $region405: #{tpu_custom_call.1} parent=402 // loop_header
      %s533 = sphi 0, %s537
      %p534 = scmp.ge.s32.totalorder %s533, 1
      %s538 = sphi %s523, %s523
      %s539 = sphi %s524, %s524
    $region406: #{tpu_custom_call.1} parent=402 // loop_header_branch
      %536 = sbr.rel (%p534) target = $region410
    $region407: #{tpu_custom_call.1} parent=402 // loop_body
      %v540 = vld [vmem:[%s538] sm:%s531]
      %541 = vst [vmem:[%s539] sm:%s531] %v540
    $region408: #{tpu_custom_call.1} parent=402 // loop_footer
      %s537 = sadd.s32 1, %s533
    $region409: #{tpu_custom_call.1} parent=402 // loop_footer_branch
      %532 = sbr.rel target = $region405
    $region410: #{tpu_custom_call.1} parent=402 // loop_exit
      _
  $region403: #{tpu_custom_call.1} parent=0 // pred_fallthru
    _
  // Predicated region
  $region422: #{tpu_custom_call.1} parent=0 // pred_check
    _
  $region423: #{tpu_custom_call.1} parent=0 // pred_check_branch
    %558 = sbr.rel (0) target = $region425
  $region424: #{tpu_custom_call.1} parent=0 // pred_region
    %559 = vsyncadd %s525, 16
  $region425: #{tpu_custom_call.1} parent=0 // pred_fallthru
    _
  %s560 = sadd.s32 %s25, 7
  %s561 = sld [smem:[#allocation7 + %s560]]
  %s562 = sld [smem:[#allocation8 + %s560]]
  %s563 = scalar_lea.vmem %s3, %s561
  %s564 = scalar_lea.vmem [#allocation2], 7
  %s565 = scalar_lea.sflag [#allocation4], 7
  // Predicated region
  $region426: #{tpu_custom_call.1} parent=0 // pred_check
    _
  $region427: #{tpu_custom_call.1} parent=0 // pred_check_branch
    %567 = sbr.rel target = $region429
  $region428: #{tpu_custom_call.1} parent=0 // pred_region
    // Predicated region
    $region441: #{tpu_custom_call.1} parent=428 // pred_check
      _
    $region442: #{tpu_custom_call.1} parent=428 // pred_check_branch
      %583 = sbr.rel (0) target = $region444
    $region443: #{tpu_custom_call.1} parent=428 // pred_region
      %s585 = ssub.s32 2, 1
      loop: start=0, step=1, limit=1
      $region445: #{tpu_custom_call.1} parent=443 // loop_pre_header
        _
      $region446: #{tpu_custom_call.1} parent=443 // loop_header
        %s587 = sphi 0, %s591
        %p588 = scmp.ge.s32.totalorder %s587, 1
        %s592 = sphi %s563, %s563
        %s593 = sphi %s564, %s564
      $region447: #{tpu_custom_call.1} parent=443 // loop_header_branch
        %590 = sbr.rel (%p588) target = $region451
      $region448: #{tpu_custom_call.1} parent=443 // loop_body
        %v594 = vld [vmem:[%s592] sm:%s585]
        %595 = vst [vmem:[%s593] sm:%s585] %v594
      $region449: #{tpu_custom_call.1} parent=443 // loop_footer
        %s591 = sadd.s32 1, %s587
      $region450: #{tpu_custom_call.1} parent=443 // loop_footer_branch
        %586 = sbr.rel target = $region446
      $region451: #{tpu_custom_call.1} parent=443 // loop_exit
        _
    $region444: #{tpu_custom_call.1} parent=428 // pred_fallthru
      _
  $region429: #{tpu_custom_call.1} parent=0 // pred_fallthru
    _
  // Predicated region
  $region430: #{tpu_custom_call.1} parent=0 // pred_check
    _
  $region431: #{tpu_custom_call.1} parent=0 // pred_check_branch
    %569 = sbr.rel (0) target = $region433
  $region432: #{tpu_custom_call.1} parent=0 // pred_region
    %s571 = ssub.s32 2, 1
    loop: start=0, step=1, limit=1
    $region434: #{tpu_custom_call.1} parent=432 // loop_pre_header
      _
    $region435: #{tpu_custom_call.1} parent=432 // loop_header
      %s573 = sphi 0, %s577
      %p574 = scmp.ge.s32.totalorder %s573, 1
      %s578 = sphi %s563, %s563
      %s579 = sphi %s564, %s564
    $region436: #{tpu_custom_call.1} parent=432 // loop_header_branch
      %576 = sbr.rel (%p574) target = $region440
    $region437: #{tpu_custom_call.1} parent=432 // loop_body
      %v580 = vld [vmem:[%s578] sm:%s571]
      %581 = vst [vmem:[%s579] sm:%s571] %v580
    $region438: #{tpu_custom_call.1} parent=432 // loop_footer
      %s577 = sadd.s32 1, %s573
    $region439: #{tpu_custom_call.1} parent=432 // loop_footer_branch
      %572 = sbr.rel target = $region435
    $region440: #{tpu_custom_call.1} parent=432 // loop_exit
      _
  $region433: #{tpu_custom_call.1} parent=0 // pred_fallthru
    _
  // Predicated region
  $region452: #{tpu_custom_call.1} parent=0 // pred_check
    _
  $region453: #{tpu_custom_call.1} parent=0 // pred_check_branch
    %598 = sbr.rel (0) target = $region455
  $region454: #{tpu_custom_call.1} parent=0 // pred_region
    %599 = vsyncadd %s565, 16
  $region455: #{tpu_custom_call.1} parent=0 // pred_fallthru
    _
  %s600 = scalar_lea.vmem %s4, %s562
  %s601 = scalar_lea.vmem [#allocation3], 7
  %s602 = scalar_lea.sflag [#allocation5], 7
  // Predicated region
  $region456: #{tpu_custom_call.1} parent=0 // pred_check
    _
  $region457: #{tpu_custom_call.1} parent=0 // pred_check_branch
    %604 = sbr.rel target = $region459
  $region458: #{tpu_custom_call.1} parent=0 // pred_region
    // Predicated region
    $region471: #{tpu_custom_call.1} parent=458 // pred_check
      _
    $region472: #{tpu_custom_call.1} parent=458 // pred_check_branch
      %620 = sbr.rel (0) target = $region474
    $region473: #{tpu_custom_call.1} parent=458 // pred_region
      %s622 = ssub.s32 2, 1
      loop: start=0, step=1, limit=1
      $region475: #{tpu_custom_call.1} parent=473 // loop_pre_header
        _
      $region476: #{tpu_custom_call.1} parent=473 // loop_header
        %s624 = sphi 0, %s628
        %p625 = scmp.ge.s32.totalorder %s624, 1
        %s629 = sphi %s600, %s600
        %s630 = sphi %s601, %s601
      $region477: #{tpu_custom_call.1} parent=473 // loop_header_branch
        %627 = sbr.rel (%p625) target = $region481
      $region478: #{tpu_custom_call.1} parent=473 // loop_body
        %v631 = vld [vmem:[%s629] sm:%s622]
        %632 = vst [vmem:[%s630] sm:%s622] %v631
      $region479: #{tpu_custom_call.1} parent=473 // loop_footer
        %s628 = sadd.s32 1, %s624
      $region480: #{tpu_custom_call.1} parent=473 // loop_footer_branch
        %623 = sbr.rel target = $region476
      $region481: #{tpu_custom_call.1} parent=473 // loop_exit
        _
    $region474: #{tpu_custom_call.1} parent=458 // pred_fallthru
      _
  $region459: #{tpu_custom_call.1} parent=0 // pred_fallthru
    _
  // Predicated region
  $region460: #{tpu_custom_call.1} parent=0 // pred_check
    _
  $region461: #{tpu_custom_call.1} parent=0 // pred_check_branch
    %606 = sbr.rel (0) target = $region463
  $region462: #{tpu_custom_call.1} parent=0 // pred_region
    %s608 = ssub.s32 2, 1
    loop: start=0, step=1, limit=1
    $region464: #{tpu_custom_call.1} parent=462 // loop_pre_header
      _
    $region465: #{tpu_custom_call.1} parent=462 // loop_header
      %s610 = sphi 0, %s614
      %p611 = scmp.ge.s32.totalorder %s610, 1
      %s615 = sphi %s600, %s600
      %s616 = sphi %s601, %s601
    $region466: #{tpu_custom_call.1} parent=462 // loop_header_branch
      %613 = sbr.rel (%p611) target = $region470
    $region467: #{tpu_custom_call.1} parent=462 // loop_body
      %v617 = vld [vmem:[%s615] sm:%s608]
      %618 = vst [vmem:[%s616] sm:%s608] %v617
    $region468: #{tpu_custom_call.1} parent=462 // loop_footer
      %s614 = sadd.s32 1, %s610
    $region469: #{tpu_custom_call.1} parent=462 // loop_footer_branch
      %609 = sbr.rel target = $region465
    $region470: #{tpu_custom_call.1} parent=462 // loop_exit
      _
  $region463: #{tpu_custom_call.1} parent=0 // pred_fallthru
    _
  // Predicated region
  $region482: #{tpu_custom_call.1} parent=0 // pred_check
    _
  $region483: #{tpu_custom_call.1} parent=0 // pred_check_branch
    %635 = sbr.rel (0) target = $region485
  $region484: #{tpu_custom_call.1} parent=0 // pred_region
    %636 = vsyncadd %s602, 16
  $region485: #{tpu_custom_call.1} parent=0 // pred_fallthru
    _
  loop: start=0, step=1, limit=128
  $region486: #{tpu_custom_call.1} parent=0 // loop_pre_header
    _
  $region487: #{tpu_custom_call.1} parent=0 // loop_header
    %s638 = sphi 0, %s642
    %p639 = scmp.ge.s32.totalorder %s638, 128
  $region488: #{tpu_custom_call.1} parent=0 // loop_header_branch
    %641 = sbr.rel (%p639) target = $region492
  $region489: #{tpu_custom_call.1} parent=0 // loop_body
    %p643 = scmp.lt.s32.totalorder %s638, 0
    %s644 = ssub.s32 0, %s638
    %s645 = scalar_select %p643, %s644, %s638
    %s646 = sand.u32 %s645, 7
    %s647 = ssub.s32 0, %s646
    %s648 = scalar_select %p643, %s647, %s646
    %p649 = scmp.ne.s32.totalorder %s648, 0
    %p650 = scmp.lt.s32.totalorder %s648, 0
    %p651 = pnand %p650, %p649
    %p652 = pneg %p651
    %s653 = sadd.s32 %s648, 8
    %s654 = scalar_select %p652, %s653, %s648
    %s655 = scalar_lea.sflag [#allocation4], %s654
    %s656 = smul.u32 1, 1
    %s657 = sshll.u32 %s656, 4
    %658 = dma.done %s655, %s657
    %s659 = scalar_lea.sflag [#allocation5], %s654
    %s660 = sshll.u32 %s656, 4
    %661 = dma.done %s659, %s660
    %s662 = sadd.s32 %s638, 8
    %p663 = scmp.lt.s32.totalorder %s662, 128
    // Predicated region
    $region493: #{tpu_custom_call.1} parent=489 // pred_check
      %p664 = pneg %p663
    $region494: #{tpu_custom_call.1} parent=489 // pred_check_branch
      %666 = sbr.rel (%p664) target = $region496
    $region495: #{tpu_custom_call.1} parent=489 // pred_region
      %s667 = sadd.s32 %s25, %s662
      %s668 = sld [smem:[#allocation7 + %s667]]
      %s669 = sld [smem:[#allocation8 + %s667]]
      %s670 = scalar_lea.vmem %s3, %s668
      %s671 = scalar_lea.vmem [#allocation2], %s662
      // Predicated region
      $region497: #{tpu_custom_call.1} parent=495 // pred_check
        _
      $region498: #{tpu_custom_call.1} parent=495 // pred_check_branch
        %673 = sbr.rel target = $region500
      $region499: #{tpu_custom_call.1} parent=495 // pred_region
        // Predicated region
        $region512: #{tpu_custom_call.1} parent=499 // pred_check
          _
        $region513: #{tpu_custom_call.1} parent=499 // pred_check_branch
          %689 = sbr.rel (0) target = $region515
        $region514: #{tpu_custom_call.1} parent=499 // pred_region
          %s691 = ssub.s32 2, 1
          loop: start=0, step=1, limit=1
          $region516: #{tpu_custom_call.1} parent=514 // loop_pre_header
            _
          $region517: #{tpu_custom_call.1} parent=514 // loop_header
            %s693 = sphi 0, %s697
            %p694 = scmp.ge.s32.totalorder %s693, 1
            %s698 = sphi %s670, %s670
            %s699 = sphi %s671, %s671
          $region518: #{tpu_custom_call.1} parent=514 // loop_header_branch
            %696 = sbr.rel (%p694) target = $region522
          $region519: #{tpu_custom_call.1} parent=514 // loop_body
            %v700 = vld [vmem:[%s698] sm:%s691]
            %701 = vst [vmem:[%s699] sm:%s691] %v700
          $region520: #{tpu_custom_call.1} parent=514 // loop_footer
            %s697 = sadd.s32 1, %s693
          $region521: #{tpu_custom_call.1} parent=514 // loop_footer_branch
            %692 = sbr.rel target = $region517
          $region522: #{tpu_custom_call.1} parent=514 // loop_exit
            _
        $region515: #{tpu_custom_call.1} parent=499 // pred_fallthru
          _
      $region500: #{tpu_custom_call.1} parent=495 // pred_fallthru
        _
      // Predicated region
      $region501: #{tpu_custom_call.1} parent=495 // pred_check
        _
      $region502: #{tpu_custom_call.1} parent=495 // pred_check_branch
        %675 = sbr.rel (0) target = $region504
      $region503: #{tpu_custom_call.1} parent=495 // pred_region
        %s677 = ssub.s32 2, 1
        loop: start=0, step=1, limit=1
        $region505: #{tpu_custom_call.1} parent=503 // loop_pre_header
          _
        $region506: #{tpu_custom_call.1} parent=503 // loop_header
          %s679 = sphi 0, %s683
          %p680 = scmp.ge.s32.totalorder %s679, 1
          %s684 = sphi %s670, %s670
          %s685 = sphi %s671, %s671
        $region507: #{tpu_custom_call.1} parent=503 // loop_header_branch
          %682 = sbr.rel (%p680) target = $region511
        $region508: #{tpu_custom_call.1} parent=503 // loop_body
          %v686 = vld [vmem:[%s684] sm:%s677]
          %687 = vst [vmem:[%s685] sm:%s677] %v686
        $region509: #{tpu_custom_call.1} parent=503 // loop_footer
          %s683 = sadd.s32 1, %s679
        $region510: #{tpu_custom_call.1} parent=503 // loop_footer_branch
          %678 = sbr.rel target = $region506
        $region511: #{tpu_custom_call.1} parent=503 // loop_exit
          _
      $region504: #{tpu_custom_call.1} parent=495 // pred_fallthru
        _
      // Predicated region
      $region523: #{tpu_custom_call.1} parent=495 // pred_check
        _
      $region524: #{tpu_custom_call.1} parent=495 // pred_check_branch
        %704 = sbr.rel (0) target = $region526
      $region525: #{tpu_custom_call.1} parent=495 // pred_region
        %705 = vsyncadd %s655, 16
      $region526: #{tpu_custom_call.1} parent=495 // pred_fallthru
        _
      %s706 = scalar_lea.vmem %s4, %s669
      %s707 = scalar_lea.vmem [#allocation3], %s662
      // Predicated region
      $region527: #{tpu_custom_call.1} parent=495 // pred_check
        _
      $region528: #{tpu_custom_call.1} parent=495 // pred_check_branch
        %709 = sbr.rel target = $region530
      $region529: #{tpu_custom_call.1} parent=495 // pred_region
        // Predicated region
        $region542: #{tpu_custom_call.1} parent=529 // pred_check
          _
        $region543: #{tpu_custom_call.1} parent=529 // pred_check_branch
          %725 = sbr.rel (0) target = $region545
        $region544: #{tpu_custom_call.1} parent=529 // pred_region
          %s727 = ssub.s32 2, 1
          loop: start=0, step=1, limit=1
          $region546: #{tpu_custom_call.1} parent=544 // loop_pre_header
            _
          $region547: #{tpu_custom_call.1} parent=544 // loop_header
            %s729 = sphi 0, %s733
            %p730 = scmp.ge.s32.totalorder %s729, 1
            %s734 = sphi %s706, %s706
            %s735 = sphi %s707, %s707
          $region548: #{tpu_custom_call.1} parent=544 // loop_header_branch
            %732 = sbr.rel (%p730) target = $region552
          $region549: #{tpu_custom_call.1} parent=544 // loop_body
            %v736 = vld [vmem:[%s734] sm:%s727]
            %737 = vst [vmem:[%s735] sm:%s727] %v736
          $region550: #{tpu_custom_call.1} parent=544 // loop_footer
            %s733 = sadd.s32 1, %s729
          $region551: #{tpu_custom_call.1} parent=544 // loop_footer_branch
            %728 = sbr.rel target = $region547
          $region552: #{tpu_custom_call.1} parent=544 // loop_exit
            _
        $region545: #{tpu_custom_call.1} parent=529 // pred_fallthru
          _
      $region530: #{tpu_custom_call.1} parent=495 // pred_fallthru
        _
      // Predicated region
      $region531: #{tpu_custom_call.1} parent=495 // pred_check
        _
      $region532: #{tpu_custom_call.1} parent=495 // pred_check_branch
        %711 = sbr.rel (0) target = $region534
      $region533: #{tpu_custom_call.1} parent=495 // pred_region
        %s713 = ssub.s32 2, 1
        loop: start=0, step=1, limit=1
        $region535: #{tpu_custom_call.1} parent=533 // loop_pre_header
          _
        $region536: #{tpu_custom_call.1} parent=533 // loop_header
          %s715 = sphi 0, %s719
          %p716 = scmp.ge.s32.totalorder %s715, 1
          %s720 = sphi %s706, %s706
          %s721 = sphi %s707, %s707
        $region537: #{tpu_custom_call.1} parent=533 // loop_header_branch
          %718 = sbr.rel (%p716) target = $region541
        $region538: #{tpu_custom_call.1} parent=533 // loop_body
          %v722 = vld [vmem:[%s720] sm:%s713]
          %723 = vst [vmem:[%s721] sm:%s713] %v722
        $region539: #{tpu_custom_call.1} parent=533 // loop_footer
          %s719 = sadd.s32 1, %s715
        $region540: #{tpu_custom_call.1} parent=533 // loop_footer_branch
          %714 = sbr.rel target = $region536
        $region541: #{tpu_custom_call.1} parent=533 // loop_exit
          _
      $region534: #{tpu_custom_call.1} parent=495 // pred_fallthru
        _
      // Predicated region
      $region553: #{tpu_custom_call.1} parent=495 // pred_check
        _
      $region554: #{tpu_custom_call.1} parent=495 // pred_check_branch
        %740 = sbr.rel (0) target = $region556
      $region555: #{tpu_custom_call.1} parent=495 // pred_region
        %741 = vsyncadd %s659, 16
      $region556: #{tpu_custom_call.1} parent=495 // pred_fallthru
        _
    $region496: #{tpu_custom_call.1} parent=489 // pred_fallthru
      _
  $region490: #{tpu_custom_call.1} parent=0 // loop_footer
    %s642 = sadd.s32 1, %s638
  $region491: #{tpu_custom_call.1} parent=0 // loop_footer_branch
    %637 = sbr.rel target = $region487
  $region492: #{tpu_custom_call.1} parent=0 // loop_exit
    _
  %v742 = vld [vmem:[#allocation2] sm:$0xff]
  %v743 = vld [vmem:[#allocation2 + $0x8] sm:$0xff]
  %v744 = vld [vmem:[#allocation2 + $0x10] sm:$0xff]
  %v745 = vld [vmem:[#allocation2 + $0x18] sm:$0xff]
  %v746 = vld [vmem:[#allocation2 + $0x20] sm:$0xff]
  %v747 = vld [vmem:[#allocation2 + $0x28] sm:$0xff]
  %v748 = vld [vmem:[#allocation2 + $0x30] sm:$0xff]
  %v749 = vld [vmem:[#allocation2 + $0x38] sm:$0xff]
  %v750 = vld [vmem:[#allocation2 + $0x40] sm:$0xff]
  %v751 = vld [vmem:[#allocation2 + $0x48] sm:$0xff]
  %v752 = vld [vmem:[#allocation2 + $0x50] sm:$0xff]
  %v753 = vld [vmem:[#allocation2 + $0x58] sm:$0xff]
  %v754 = vld [vmem:[#allocation2 + $0x60] sm:$0xff]
  %v755 = vld [vmem:[#allocation2 + $0x68] sm:$0xff]
  %v756 = vld [vmem:[#allocation2 + $0x70] sm:$0xff]
  %v757 = vld [vmem:[#allocation2 + $0x78] sm:$0xff]
  %v758 = vld [vmem:[#allocation3] sm:$0xff]
  %v759 = vld [vmem:[#allocation3 + $0x8] sm:$0xff]
  %v760 = vld [vmem:[#allocation3 + $0x10] sm:$0xff]
  %v761 = vld [vmem:[#allocation3 + $0x18] sm:$0xff]
  %v762 = vld [vmem:[#allocation3 + $0x20] sm:$0xff]
  %v763 = vld [vmem:[#allocation3 + $0x28] sm:$0xff]
  %v764 = vld [vmem:[#allocation3 + $0x30] sm:$0xff]
  %v765 = vld [vmem:[#allocation3 + $0x38] sm:$0xff]
  %v766 = vld [vmem:[#allocation3 + $0x40] sm:$0xff]
  %v767 = vld [vmem:[#allocation3 + $0x48] sm:$0xff]
  %v768 = vld [vmem:[#allocation3 + $0x50] sm:$0xff]
  %v769 = vld [vmem:[#allocation3 + $0x58] sm:$0xff]
  %v770 = vld [vmem:[#allocation3 + $0x60] sm:$0xff]
  %v771 = vld [vmem:[#allocation3 + $0x68] sm:$0xff]
  %v772 = vld [vmem:[#allocation3 + $0x70] sm:$0xff]
  %v773 = vld [vmem:[#allocation3 + $0x78] sm:$0xff]
  %v774 = vmul.f32 %v742, %v758
  %v775 = vmul.f32 %v743, %v759
  %v776 = vmul.f32 %v744, %v760
  %v777 = vmul.f32 %v745, %v761
  %v778 = vmul.f32 %v746, %v762
  %v779 = vmul.f32 %v747, %v763
  %v780 = vmul.f32 %v748, %v764
  %v781 = vmul.f32 %v749, %v765
  %v782 = vmul.f32 %v750, %v766
  %v783 = vmul.f32 %v751, %v767
  %v784 = vmul.f32 %v752, %v768
  %v785 = vmul.f32 %v753, %v769
  %v786 = vmul.f32 %v754, %v770
  %v787 = vmul.f32 %v755, %v771
  %v788 = vmul.f32 %v756, %v772
  %v789 = vmul.f32 %v757, %v773
  %vm790 = vcmask 261120
  %v791 = vsel %vm790, %v774, 0.0
  %792 = vadd.xlane.f32.xlu0 %v791
  %v793 = vpop.xlane.xlu0 %792
  %v794 = vsel %vm790, %v775, 0.0
  %795 = vadd.xlane.f32.xlu0 %v794
  %v796 = vpop.xlane.xlu0 %795
  %v797 = vsel %vm790, %v776, 0.0
  %798 = vadd.xlane.f32.xlu0 %v797
  %v799 = vpop.xlane.xlu0 %798
  %v800 = vsel %vm790, %v777, 0.0
  %801 = vadd.xlane.f32.xlu0 %v800
  %v802 = vpop.xlane.xlu0 %801
  %v803 = vsel %vm790, %v778, 0.0
  %804 = vadd.xlane.f32.xlu0 %v803
  %v805 = vpop.xlane.xlu0 %804
  %v806 = vsel %vm790, %v779, 0.0
  %807 = vadd.xlane.f32.xlu0 %v806
  %v808 = vpop.xlane.xlu0 %807
  %v809 = vsel %vm790, %v780, 0.0
  %810 = vadd.xlane.f32.xlu0 %v809
  %v811 = vpop.xlane.xlu0 %810
  %v812 = vsel %vm790, %v781, 0.0
  %813 = vadd.xlane.f32.xlu0 %v812
  %v814 = vpop.xlane.xlu0 %813
  %v815 = vsel %vm790, %v782, 0.0
  %816 = vadd.xlane.f32.xlu0 %v815
  %v817 = vpop.xlane.xlu0 %816
  %v818 = vsel %vm790, %v783, 0.0
  %819 = vadd.xlane.f32.xlu0 %v818
  %v820 = vpop.xlane.xlu0 %819
  %v821 = vsel %vm790, %v784, 0.0
  %822 = vadd.xlane.f32.xlu0 %v821
  %v823 = vpop.xlane.xlu0 %822
  %v824 = vsel %vm790, %v785, 0.0
  %825 = vadd.xlane.f32.xlu0 %v824
  %v826 = vpop.xlane.xlu0 %825
  %v827 = vsel %vm790, %v786, 0.0
  %828 = vadd.xlane.f32.xlu0 %v827
  %v829 = vpop.xlane.xlu0 %828
  %v830 = vsel %vm790, %v787, 0.0
  %831 = vadd.xlane.f32.xlu0 %v830
  %v832 = vpop.xlane.xlu0 %831
  %v833 = vsel %vm790, %v788, 0.0
  %834 = vadd.xlane.f32.xlu0 %v833
  %v835 = vpop.xlane.xlu0 %834
  %v836 = vsel %vm790, %v789, 0.0
  %837 = vadd.xlane.f32.xlu0 %v836
  %v838 = vpop.xlane.xlu0 %837
  %v839 = vld [vmem:[%s2] sm:$0xff]
  %v840 = vld [vmem:[%s2 + $0x8] sm:$0xff]
  %v841 = vld [vmem:[%s2 + $0x10] sm:$0xff]
  %v842 = vld [vmem:[%s2 + $0x18] sm:$0xff]
  %v843 = vld [vmem:[%s2 + $0x20] sm:$0xff]
  %v844 = vld [vmem:[%s2 + $0x28] sm:$0xff]
  %v845 = vld [vmem:[%s2 + $0x30] sm:$0xff]
  %v846 = vld [vmem:[%s2 + $0x38] sm:$0xff]
  %v847 = vld [vmem:[%s2 + $0x40] sm:$0xff]
  %v848 = vld [vmem:[%s2 + $0x48] sm:$0xff]
  %v849 = vld [vmem:[%s2 + $0x50] sm:$0xff]
  %v850 = vld [vmem:[%s2 + $0x58] sm:$0xff]
  %v851 = vld [vmem:[%s2 + $0x60] sm:$0xff]
  %v852 = vld [vmem:[%s2 + $0x68] sm:$0xff]
  %v853 = vld [vmem:[%s2 + $0x70] sm:$0xff]
  %v854 = vld [vmem:[%s2 + $0x78] sm:$0xff]
  %v855 = vadd.f32 %v793, %v839
  %v856 = vadd.f32 %v796, %v840
  %v857 = vadd.f32 %v799, %v841
  %v858 = vadd.f32 %v802, %v842
  %v859 = vadd.f32 %v805, %v843
  %v860 = vadd.f32 %v808, %v844
  %v861 = vadd.f32 %v811, %v845
  %v862 = vadd.f32 %v814, %v846
  %v863 = vadd.f32 %v817, %v847
  %v864 = vadd.f32 %v820, %v848
  %v865 = vadd.f32 %v823, %v849
  %v866 = vadd.f32 %v826, %v850
  %v867 = vadd.f32 %v829, %v851
  %v868 = vadd.f32 %v832, %v852
  %v869 = vadd.f32 %v835, %v853
  %v870 = vadd.f32 %v838, %v854
  %vm871 = vcmask 7168
  %872 = vst.msk [vmem:[%s5] sm:$0xff] %vm871, %v855
  %873 = vst.msk [vmem:[%s5 + $0x8] sm:$0xff] %vm871, %v856
  %874 = vst.msk [vmem:[%s5 + $0x10] sm:$0xff] %vm871, %v857
  %875 = vst.msk [vmem:[%s5 + $0x18] sm:$0xff] %vm871, %v858
  %876 = vst.msk [vmem:[%s5 + $0x20] sm:$0xff] %vm871, %v859
  %877 = vst.msk [vmem:[%s5 + $0x28] sm:$0xff] %vm871, %v860
  %878 = vst.msk [vmem:[%s5 + $0x30] sm:$0xff] %vm871, %v861
  %879 = vst.msk [vmem:[%s5 + $0x38] sm:$0xff] %vm871, %v862
  %880 = vst.msk [vmem:[%s5 + $0x40] sm:$0xff] %vm871, %v863
  %881 = vst.msk [vmem:[%s5 + $0x48] sm:$0xff] %vm871, %v864
  %882 = vst.msk [vmem:[%s5 + $0x50] sm:$0xff] %vm871, %v865
  %883 = vst.msk [vmem:[%s5 + $0x58] sm:$0xff] %vm871, %v866
  %884 = vst.msk [vmem:[%s5 + $0x60] sm:$0xff] %vm871, %v867
  %885 = vst.msk [vmem:[%s5 + $0x68] sm:$0xff] %vm871, %v868
  %886 = vst.msk [vmem:[%s5 + $0x70] sm:$0xff] %vm871, %v869
  %887 = vst.msk [vmem:[%s5 + $0x78] sm:$0xff] %vm871, %v870
  // Predicated region
  $region557: #{tpu_custom_call.1} parent=0 // pred_check
    _
  $region558: #{tpu_custom_call.1} parent=0 // pred_check_branch
    %889 = sbr.rel (0) target = $region560
  $region559: #{tpu_custom_call.1} parent=0 // pred_region
    _
  $region560: #{tpu_custom_call.1} parent=0 // pred_fallthru
    _
  // Predicated region
  $region561: #{tpu_custom_call.1} parent=0 // pred_check
    _
  $region562: #{tpu_custom_call.1} parent=0 // pred_check_branch
    %891 = sbr.rel (0) target = $region564
  $region563: #{tpu_custom_call.1} parent=0 // pred_region
    _
  $region564: #{tpu_custom_call.1} parent=0 // pred_fallthru
    _
  %892 = vsyncmov [#allocation4]
  %s893 = vpop.sfrf %892
  %p894 = scmp.eq.s32.totalorder %s893, 0
  %p895 = pneg %p894
  %897 = shalt.err (%p895)
  %s898 = scalar_lea.sflag [#allocation4], 1
  %899 = vsyncmov %s898
  %s900 = vpop.sfrf %899
  %p901 = scmp.eq.s32.totalorder %s900, 0
  %p902 = pneg %p901
  %904 = shalt.err (%p902)
  %s905 = scalar_lea.sflag [#allocation4], 2
  %906 = vsyncmov %s905
  %s907 = vpop.sfrf %906
  %p908 = scmp.eq.s32.totalorder %s907, 0
  %p909 = pneg %p908
  %911 = shalt.err (%p909)
  %s912 = scalar_lea.sflag [#allocation4], 3
  %913 = vsyncmov %s912
  %s914 = vpop.sfrf %913
  %p915 = scmp.eq.s32.totalorder %s914, 0
  %p916 = pneg %p915
  %918 = shalt.err (%p916)
  %s919 = scalar_lea.sflag [#allocation4], 4
  %920 = vsyncmov %s919
  %s921 = vpop.sfrf %920
  %p922 = scmp.eq.s32.totalorder %s921, 0
  %p923 = pneg %p922
  %925 = shalt.err (%p923)
  %s926 = scalar_lea.sflag [#allocation4], 5
  %927 = vsyncmov %s926
  %s928 = vpop.sfrf %927
  %p929 = scmp.eq.s32.totalorder %s928, 0
  %p930 = pneg %p929
  %932 = shalt.err (%p930)
  %s933 = scalar_lea.sflag [#allocation4], 6
  %934 = vsyncmov %s933
  %s935 = vpop.sfrf %934
  %p936 = scmp.eq.s32.totalorder %s935, 0
  %p937 = pneg %p936
  %939 = shalt.err (%p937)
  %s940 = scalar_lea.sflag [#allocation4], 7
  %941 = vsyncmov %s940
  %s942 = vpop.sfrf %941
  %p943 = scmp.eq.s32.totalorder %s942, 0
  %p944 = pneg %p943
  %946 = shalt.err (%p944)
  %947 = vsyncmov [#allocation5]
  %s948 = vpop.sfrf %947
  %p949 = scmp.eq.s32.totalorder %s948, 0
  %p950 = pneg %p949
  %952 = shalt.err (%p950)
  %s953 = scalar_lea.sflag [#allocation5], 1
  %954 = vsyncmov %s953
  %s955 = vpop.sfrf %954
  %p956 = scmp.eq.s32.totalorder %s955, 0
  %p957 = pneg %p956
  %959 = shalt.err (%p957)
  %s960 = scalar_lea.sflag [#allocation5], 2
  %961 = vsyncmov %s960
  %s962 = vpop.sfrf %961
  %p963 = scmp.eq.s32.totalorder %s962, 0
  %p964 = pneg %p963
  %966 = shalt.err (%p964)
  %s967 = scalar_lea.sflag [#allocation5], 3
  %968 = vsyncmov %s967
  %s969 = vpop.sfrf %968
  %p970 = scmp.eq.s32.totalorder %s969, 0
  %p971 = pneg %p970
  %973 = shalt.err (%p971)
  %s974 = scalar_lea.sflag [#allocation5], 4
  %975 = vsyncmov %s974
  %s976 = vpop.sfrf %975
  %p977 = scmp.eq.s32.totalorder %s976, 0
  %p978 = pneg %p977
  %980 = shalt.err (%p978)
  %s981 = scalar_lea.sflag [#allocation5], 5
  %982 = vsyncmov %s981
  %s983 = vpop.sfrf %982
  %p984 = scmp.eq.s32.totalorder %s983, 0
  %p985 = pneg %p984
  %987 = shalt.err (%p985)
  %s988 = scalar_lea.sflag [#allocation5], 6
  %989 = vsyncmov %s988
  %s990 = vpop.sfrf %989
  %p991 = scmp.eq.s32.totalorder %s990, 0
  %p992 = pneg %p991
  %994 = shalt.err (%p992)
  %s995 = scalar_lea.sflag [#allocation5], 7
  %996 = vsyncmov %s995
  %s997 = vpop.sfrf %996
  %p998 = scmp.eq.s32.totalorder %s997, 0
  %p999 = pneg %p998
  %1001 = shalt.err (%p999)

</llo_original>
